<compile_context>
chip_gen: v6e
topology: v6e:2x2x1
jax: 0.10.0
libtpu: 0.0.40
codegen_flags: <defaults>
</compile_context>

<pallas_src>
import functools

import jax
import jax.numpy as jnp
from jax.experimental import pallas as pl
from jax.experimental.pallas import tpu as pltpu

LN_EPS = 1e-6  # matches LayerNorm(features, eps=1e-06)


def sublayer_connection_kernel(x_ref, gamma_ref, beta_ref, w_ref, b_ref, o_ref):
    # x_ref: (tm, d) tile of flattened tokens (residual-stream input).
    x = x_ref[...]
    xf = x.astype(jnp.float32)
    d = xf.shape[-1]

    # --- LayerNorm (PyTorch semantics: unbiased std, eps added to std) ---
    mean = jnp.mean(xf, axis=-1, keepdims=True)
    xc = xf - mean
    var = jnp.sum(xc * xc, axis=-1, keepdims=True) * (1.0 / (d - 1))
    inv = pl.reciprocal(jnp.sqrt(var) + LN_EPS, approx=True)     # EUP, (tm, 1)
    normed = gamma_ref[...].astype(jnp.float32) * (xc * inv) \
        + beta_ref[...].astype(jnp.float32)                      # (tm, d) f32

    # --- sublayer: Linear(d, d), bf16 operands on the MXU, f32 accumulate ---
    s = jnp.dot(normed.astype(w_ref.dtype), w_ref[...],
                preferred_element_type=jnp.float32)
    s = s + b_ref[...].astype(jnp.float32)

    # --- dropout: identity in eval mode ---
    # TODO(synk): training-mode stochastic dropout not implemented.

    # --- residual add ---
    o_ref[...] = (xf + s).astype(o_ref.dtype)


def _pick_tm(M, tm):
    """Row-tile heuristic: big tiles, but keep >= 4 grid steps when possible."""
    if tm is None:
        tm = 512
    tm = min(tm, M)
    if M >= 32:
        # At least 4 grid steps so each v7x TensorCore pipelines >= 2 tiles.
        tm = min(tm, pl.cdiv(M, 4))
    tm = max(8, (tm // 8) * 8)     # multiple of 8 sublanes
    return tm


def sublayer_connection(x, gamma, beta, w, b, *, tm=None):
    """x: (B, S, d).  gamma/beta: (d,) LayerNorm params.
       w: (d, d) sublayer Linear weight, pre-transposed vs nn.Linear.weight.
       b: (d,) sublayer Linear bias.  Returns (B, S, d) in x.dtype."""
    B, S, d = x.shape
    assert d % 128 == 0, "feature dim must be a multiple of 128 (lane-dense tiles)"
    M = B * S
    tm = _pick_tm(M, tm)
    n_steps = pl.cdiv(M, tm)
    M_pad = n_steps * tm

    x2 = x.reshape(M, d)
    if M_pad != M:
        # Zero rows are safe: xc == 0 -> normed == beta; padded rows discarded.
        x2 = jnp.pad(x2, ((0, M_pad - M), (0, 0)))

    gamma2 = gamma.reshape(1, d).astype(jnp.float32)
    beta2 = beta.reshape(1, d).astype(jnp.float32)
    w_lo = w.astype(jnp.bfloat16)           # bf16-native MXU; half the VMEM
    b2 = b.reshape(1, d).astype(jnp.float32)

    # Constant-index operands never re-DMA -> single buffer.
    resident = functools.partial(pl.BlockSpec, pipeline_mode=pl.Buffered(1))

    out = pl.pallas_call(
        sublayer_connection_kernel,
        out_shape=jax.ShapeDtypeStruct((M_pad, d), x.dtype),
        grid_spec=pltpu.PrefetchScalarGridSpec(
            num_scalar_prefetch=0,
            grid=(n_steps,),
            in_specs=[
                pl.BlockSpec((tm, d), lambda i: (i, 0)),    # x tile (pipelined)
                resident((1, d), lambda i: (0, 0)),         # LayerNorm gamma (a_2)
                resident((1, d), lambda i: (0, 0)),         # LayerNorm beta  (b_2)
                resident((d, d), lambda i: (0, 0)),         # sublayer weight (bf16, resident)
                resident((1, d), lambda i: (0, 0)),         # sublayer bias
            ],
            out_specs=pl.BlockSpec((tm, d), lambda i: (i, 0)),
        ),
        compiler_params=pltpu.CompilerParams(
            dimension_semantics=("parallel",)),
    )(x2, gamma2, beta2, w_lo, b2)

    if M_pad != M:
        out = out[:M]
    return out.reshape(B, S, d)


if __name__ == "__main__":
    # Small demo shapes consistent with the module (size = 768 as in init_mBloSA).
    # M = B*S = 256 rows -> tm auto-picks 64, giving a 4-step "parallel" grid
    # (>= 2 pipelined tiles per v7x TensorCore).
    B, S, d = 2, 128, 768

    key = jax.random.PRNGKey(0)
    kx, kg, kb, kw = jax.random.split(key, 4)

    x = jax.random.normal(kx, (B, S, d), dtype=jnp.float32)
    # LayerNorm params (module inits to ones/zeros; perturb to exercise the math).
    gamma = 1.0 + 0.1 * jax.random.normal(kg, (d,), dtype=jnp.float32)
    beta = 0.1 * jax.random.normal(kb, (d,), dtype=jnp.float32)
    # sublayer = customizedLinear(768, 768): Xavier-uniform weight, zero bias.
    bound = (6.0 / (d + d)) ** 0.5
    w = jax.random.uniform(kw, (d, d), dtype=jnp.float32, minval=-bound, maxval=bound)
    b = jnp.zeros((d,), dtype=jnp.float32)

    y = sublayer_connection(x, gamma, beta, w, b)
    jax.block_until_ready(y)

    # Pure-JAX reference (eval-mode forward: dropout is identity), full f32.
    mean = jnp.mean(x, axis=-1, keepdims=True)
    std = jnp.std(x, axis=-1, keepdims=True, ddof=1)   # torch.std -> unbiased
    normed = gamma * (x - mean) / (std + LN_EPS) + beta
    y_ref = x + (normed @ w + b)

    assert y.shape == (B, S, d)
    # Tolerance loosened vs. the pure-f32 reference: kernel uses bf16 matmul
    # operands (f32 accumulate) and an approximate EUP reciprocal in the LN.
    assert jnp.allclose(y, y_ref, atol=6e-2, rtol=2e-2), \
        float(jnp.max(jnp.abs(y - y_ref)))

    print("KERNEL_OK")
</pallas_src>

<mosaic_0001>
module attributes {stable_mosaic.version = 11 : i64} {
  func.func @sublayer_connection_kernel(%arg0: i32, %arg1: memref<64x768xf32, #tpu.memory_space<vmem>>, %arg2: memref<1x768xf32, #tpu.memory_space<vmem>>, %arg3: memref<1x768xf32, #tpu.memory_space<vmem>>, %arg4: memref<768x768xbf16, #tpu.memory_space<vmem>>, %arg5: memref<1x768xf32, #tpu.memory_space<vmem>>, %arg6: memref<64x768xf32, #tpu.memory_space<vmem>>) attributes {dimension_semantics = [#tpu.dimension_semantics<parallel>], iteration_bounds = array<i64: 4>, scalar_prefetch = 0 : i64, scratch_operands = 0 : i64, tpu.core_type = #tpu.core_type<tc>, window_params = [{transform_indices = @transform_0, window_bounds = array<i64: 64, 768>}, {pipeline_mode = #tpu.pipeline_mode<synchronous>, transform_indices = @transform_1, window_bounds = array<i64: 1, 768>}, {pipeline_mode = #tpu.pipeline_mode<synchronous>, transform_indices = @transform_2, window_bounds = array<i64: 1, 768>}, {pipeline_mode = #tpu.pipeline_mode<synchronous>, transform_indices = @transform_3, window_bounds = array<i64: 768, 768>}, {pipeline_mode = #tpu.pipeline_mode<synchronous>, transform_indices = @transform_4, window_bounds = array<i64: 1, 768>}, {transform_indices = @transform_5, window_bounds = array<i64: 64, 768>}]} {
    %c0 = arith.constant 0 : index
    %c0_0 = arith.constant 0 : index
    %0 = vector.load %arg1[%c0, %c0_0] : memref<64x768xf32, #tpu.memory_space<vmem>>, vector<64x768xf32>
    %cst = arith.constant dense<0.000000e+00> : vector<64xf32>
    %1 = vector.multi_reduction <add>, %0, %cst [1] : vector<64x768xf32> to vector<64xf32>
    %2 = vector.shape_cast %1 : vector<64xf32> to vector<64x1xf32>
    %cst_1 = arith.constant 7.680000e+02 : f32
    %3 = vector.broadcast %cst_1 : f32 to vector<64x1xf32>
    %4 = arith.divf %2, %3 : vector<64x1xf32>
    %5 = vector.broadcast %4 : vector<64x1xf32> to vector<64x768xf32>
    %6 = arith.subf %0, %5 : vector<64x768xf32>
    %7 = arith.mulf %6, %6 : vector<64x768xf32>
    %cst_2 = arith.constant dense<0.000000e+00> : vector<64xf32>
    %8 = vector.multi_reduction <add>, %7, %cst_2 [1] : vector<64x768xf32> to vector<64xf32>
    %9 = vector.shape_cast %8 : vector<64xf32> to vector<64x1xf32>
    %cst_3 = arith.constant 0.00130378094 : f32
    %10 = vector.broadcast %cst_3 : f32 to vector<64x1xf32>
    %11 = arith.mulf %9, %10 : vector<64x1xf32>
    %12 = math.sqrt %11 : vector<64x1xf32>
    %cst_4 = arith.constant 9.99999997E-7 : f32
    %13 = vector.broadcast %cst_4 : f32 to vector<64x1xf32>
    %14 = arith.addf %12, %13 : vector<64x1xf32>
    %15 = tpu.reciprocal %14 {approx = true} : vector<64x1xf32> -> vector<64x1xf32>
    %c0_5 = arith.constant 0 : index
    %c0_6 = arith.constant 0 : index
    %16 = vector.load %arg2[%c0_5, %c0_6] : memref<1x768xf32, #tpu.memory_space<vmem>>, vector<1x768xf32>
    %17 = vector.broadcast %15 : vector<64x1xf32> to vector<64x768xf32>
    %18 = arith.mulf %6, %17 : vector<64x768xf32>
    %19 = vector.broadcast %16 : vector<1x768xf32> to vector<64x768xf32>
    %20 = arith.mulf %19, %18 : vector<64x768xf32>
    %c0_7 = arith.constant 0 : index
    %c0_8 = arith.constant 0 : index
    %21 = vector.load %arg3[%c0_7, %c0_8] : memref<1x768xf32, #tpu.memory_space<vmem>>, vector<1x768xf32>
    %22 = vector.broadcast %21 : vector<1x768xf32> to vector<64x768xf32>
    %23 = arith.addf %20, %22 : vector<64x768xf32>
    %24 = arith.truncf %23 : vector<64x768xf32> to vector<64x768xbf16>
    %c0_9 = arith.constant 0 : index
    %c0_10 = arith.constant 0 : index
    %25 = vector.load %arg4[%c0_9, %c0_10] : memref<768x768xbf16, #tpu.memory_space<vmem>>, vector<768x768xbf16>
    %cst_11 = arith.constant dense<0.000000e+00> : vector<64x768xf32>
    %26 = tpu.matmul %24, %25, %cst_11 {dimension_numbers = #tpu.dot_dimension_numbers<[1], [0], [0], [1], [0, 0, 1, 1], [], []>} : vector<64x768xbf16>, vector<768x768xbf16>, vector<64x768xf32> -> vector<64x768xf32>
    %c0_12 = arith.constant 0 : index
    %c0_13 = arith.constant 0 : index
    %27 = vector.load %arg5[%c0_12, %c0_13] : memref<1x768xf32, #tpu.memory_space<vmem>>, vector<1x768xf32>
    %28 = vector.broadcast %27 : vector<1x768xf32> to vector<64x768xf32>
    %29 = arith.addf %26, %28 : vector<64x768xf32>
    %30 = arith.addf %0, %29 : vector<64x768xf32>
    %c0_14 = arith.constant 0 : index
    %c0_15 = arith.constant 0 : index
    %31 = vector.load %arg6[%c0_14, %c0_15] : memref<64x768xf32, #tpu.memory_space<vmem>>, vector<64x768xf32>
    tpu.vector_store %arg6[%c0_14, %c0_15], %30 {strides = array<i32>} : memref<64x768xf32, #tpu.memory_space<vmem>>, vector<64x768xf32>,
    return
  }
  func.func @transform_0(%arg0: i32) -> (i32, i32) {
    %c0_i32 = arith.constant 0 : i32
    %c0_i32_0 = arith.constant 0 : i32
    return %arg0, %c0_i32 : i32, i32
  }
  func.func @transform_1(%arg0: i32) -> (i32, i32) {
    %c0_i32 = arith.constant 0 : i32
    %c0_i32_0 = arith.constant 0 : i32
    %c0_i32_1 = arith.constant 0 : i32
    return %c0_i32, %c0_i32_0 : i32, i32
  }
  func.func @transform_2(%arg0: i32) -> (i32, i32) {
    %c0_i32 = arith.constant 0 : i32
    %c0_i32_0 = arith.constant 0 : i32
    %c0_i32_1 = arith.constant 0 : i32
    return %c0_i32, %c0_i32_0 : i32, i32
  }
  func.func @transform_3(%arg0: i32) -> (i32, i32) {
    %c0_i32 = arith.constant 0 : i32
    %c0_i32_0 = arith.constant 0 : i32
    %c0_i32_1 = arith.constant 0 : i32
    return %c0_i32, %c0_i32_0 : i32, i32
  }
  func.func @transform_4(%arg0: i32) -> (i32, i32) {
    %c0_i32 = arith.constant 0 : i32
    %c0_i32_0 = arith.constant 0 : i32
    %c0_i32_1 = arith.constant 0 : i32
    return %c0_i32, %c0_i32_0 : i32, i32
  }
  func.func @transform_5(%arg0: i32) -> (i32, i32) {
    %c0_i32 = arith.constant 0 : i32
    %c0_i32_0 = arith.constant 0 : i32
    return %arg0, %c0_i32 : i32, i32
  }
}

</mosaic_0001>

<llo_original>
// kernel: tpu_custom_call.1
$region0: #{tpu_custom_call.1}
  #allocation0 [shape = 'u32[]', space=smem, size = 0x4, offset = 0x4, fixed_abs, tag = 'smem constant byte address 0x4 - core index']
  #allocation1 [shape = 'u32[144,128]{1,0:T(1,128)}', space=vmem, size = 0x12000, scoped, tag = 'internal scratch']
  %s0 = inlined_call_operand.hbm [shape: f32[256,768], index: 0, kind: input, shape index: {}]
  %s1 = inlined_call_operand.hbm [shape: f32[1,768], index: 1, kind: input, shape index: {}]
  %s2 = inlined_call_operand.hbm [shape: f32[1,768], index: 2, kind: input, shape index: {}]
  %s3 = inlined_call_operand.hbm [shape: bf16[768,768], index: 3, kind: input, shape index: {}]
  %s4 = inlined_call_operand.hbm [shape: f32[1,768], index: 4, kind: input, shape index: {}]
  %s5 = inlined_call_operand.hbm [shape: f32[256,768], index: 5, kind: output, shape index: {}]
  %s6 = sld [smem:[#allocation0]]
  $region73: #{tpu_custom_call.1} parent=0
    _
  %s8 = ssub.s32 1, %s6
  %s9 = scalar_select 0, %s8, %s6
  $region1: #{tpu_custom_call.1} parent=0
    #allocation2 [shape = 'u8[393216]{0}', space=vmem, size = 0x60000, scoped, tag = 'input window, operand 0']
    #allocation3 [shape = 's32[2]{0}', space=sflag, size = 0x8, scoped, tag = 'scoped memory for tpu_custom_call.1']
    #allocation4 [shape = 's32[2]{0}', space=sflag, size = 0x8, scoped, tag = 'scoped memory for tpu_custom_call.1']
    #allocation5 [shape = 'u8[3072]{0}', space=vmem, size = 0xc00, scoped, tag = 'input window, operand 1, single buffered']
    #allocation6 [shape = 's32[1]{0}', space=sflag, size = 0x4, scoped, tag = 'scoped memory for tpu_custom_call.1']
    #allocation7 [shape = 'u8[3072]{0}', space=vmem, size = 0xc00, scoped, tag = 'input window, operand 2, single buffered']
    #allocation8 [shape = 'u8[1179648]{0}', space=vmem, size = 0x120000, scoped, tag = 'input window, operand 3, single buffered']
    #allocation9 [shape = 's32[1]{0}', space=sflag, size = 0x4, scoped, tag = 'scoped memory for tpu_custom_call.1']
    #allocation10 [shape = 'u8[3072]{0}', space=vmem, size = 0xc00, scoped, tag = 'input window, operand 4, single buffered']
    #allocation11 [shape = 'u8[393216]{0}', space=vmem, size = 0x60000, scoped, tag = 'output window, operand 0']
    %10 = vsyncpa [#allocation3], 0
    %s11 = scalar_lea.sflag [#allocation3], 1
    %12 = vsyncpa %s11, 0
    %13 = vsyncpa [#allocation6], 0
    %14 = vsyncpa [#allocation9], 0
    %15 = vsyncpa [#allocation4], 0
    %s16 = scalar_lea.sflag [#allocation4], 1
    %17 = vsyncpa %s16, 0
    loop: start=0, step=1, limit=6
    $region2: #{tpu_custom_call.1} parent=1 // loop_pre_header
      _
    $region3: #{tpu_custom_call.1} parent=1 // loop_header
      %s19 = sphi 0, %s23
      %p20 = scmp.ge.s32.totalorder %s19, 6
      %s29 = sphi 0, %s31
      %s32 = sphi 0, %s29
      %s33 = sphi 0, %s32
      %s49 = sphi 0, %s33
      %s53 = sphi 0, %s53
      %s55 = sphi 0, %s53
      %s56 = sphi 0, %s55
      %s70 = sphi 0, %s56
      %s74 = sphi 0, %s74
      %s76 = sphi 0, %s74
      %s77 = sphi 0, %s76
      %s91 = sphi 0, %s77
      %s95 = sphi 0, %s95
      %s97 = sphi 0, %s95
      %s98 = sphi 0, %s97
      %s112 = sphi 0, %s98
      %s116 = sphi 0, %s116
      %s118 = sphi 0, %s116
      %s119 = sphi 0, %s118
      %s133 = sphi 0, %s119
      %s139 = sphi 0, %s141
      %s142 = sphi 0, %s139
      %s143 = sphi 0, %s142
      %s159 = sphi 0, %s143
    $region4: #{tpu_custom_call.1} parent=1 // loop_header_branch
      %22 = sbr.rel (%p20) target = $region8
    $region5: #{tpu_custom_call.1} parent=1 // loop_body
      %s24 = ssub.s32 %s19, 1
      %s25 = ssub.s32 %s19, 2
      %s26 = sadd.s32 %s19, 1
      %s27 = ssub.s32 %s19, %s26
      %p28 = scmp.eq.s32.totalorder %s27, 0
      %s30 = sadd.s32 %s29, 1
      %s31 = scalar_select %p28, %s29, %s30
      %p34 = pneg %p28
      %p35 = scmp.eq.s32.totalorder %s19, 3
      %p36 = por %p34, %p35
      %p37 = scmp.ne.s32.totalorder %s29, %s32
      %p38 = scmp.eq.s32.totalorder %s19, 0
      %p39 = por %p37, %p38
      %p40 = scmp.ne.s32.totalorder %s29, %s32
      %p41 = scmp.eq.s32.totalorder %s24, 3
      %p42 = por %p40, %p41
      %p43 = scmp.ne.s32.totalorder %s32, %s33
      %p44 = scmp.eq.s32.totalorder %s24, 0
      %p45 = por %p43, %p44
      %p46 = scmp.ne.s32.totalorder %s32, %s33
      %p47 = scmp.eq.s32.totalorder %s25, 3
      %p48 = por %p46, %p47
      %p50 = scmp.ne.s32.totalorder %s33, %s49
      %p51 = scmp.eq.s32.totalorder %s25, 0
      %p52 = por %p50, %p51
      %s54 = sadd.s32 %s53, 1
      %p57 = scmp.eq.s32.totalorder %s19, 3
      %p58 = scmp.ne.s32.totalorder %s53, %s55
      %p59 = scmp.eq.s32.totalorder %s19, 0
      %p60 = por %p58, %p59
      %p61 = scmp.ne.s32.totalorder %s53, %s55
      %p62 = scmp.eq.s32.totalorder %s24, 3
      %p63 = por %p61, %p62
      %p64 = scmp.ne.s32.totalorder %s55, %s56
      %p65 = scmp.eq.s32.totalorder %s24, 0
      %p66 = por %p64, %p65
      %p67 = scmp.ne.s32.totalorder %s55, %s56
      %p68 = scmp.eq.s32.totalorder %s25, 3
      %p69 = por %p67, %p68
      %p71 = scmp.ne.s32.totalorder %s56, %s70
      %p72 = scmp.eq.s32.totalorder %s25, 0
      %p73 = por %p71, %p72
      %s75 = sadd.s32 %s74, 1
      %p78 = scmp.eq.s32.totalorder %s19, 3
      %p79 = scmp.ne.s32.totalorder %s74, %s76
      %p80 = scmp.eq.s32.totalorder %s19, 0
      %p81 = por %p79, %p80
      %p82 = scmp.ne.s32.totalorder %s74, %s76
      %p83 = scmp.eq.s32.totalorder %s24, 3
      %p84 = por %p82, %p83
      %p85 = scmp.ne.s32.totalorder %s76, %s77
      %p86 = scmp.eq.s32.totalorder %s24, 0
      %p87 = por %p85, %p86
      %p88 = scmp.ne.s32.totalorder %s76, %s77
      %p89 = scmp.eq.s32.totalorder %s25, 3
      %p90 = por %p88, %p89
      %p92 = scmp.ne.s32.totalorder %s77, %s91
      %p93 = scmp.eq.s32.totalorder %s25, 0
      %p94 = por %p92, %p93
      %s96 = sadd.s32 %s95, 1
      %p99 = scmp.eq.s32.totalorder %s19, 3
      %p100 = scmp.ne.s32.totalorder %s95, %s97
      %p101 = scmp.eq.s32.totalorder %s19, 0
      %p102 = por %p100, %p101
      %p103 = scmp.ne.s32.totalorder %s95, %s97
      %p104 = scmp.eq.s32.totalorder %s24, 3
      %p105 = por %p103, %p104
      %p106 = scmp.ne.s32.totalorder %s97, %s98
      %p107 = scmp.eq.s32.totalorder %s24, 0
      %p108 = por %p106, %p107
      %p109 = scmp.ne.s32.totalorder %s97, %s98
      %p110 = scmp.eq.s32.totalorder %s25, 3
      %p111 = por %p109, %p110
      %p113 = scmp.ne.s32.totalorder %s98, %s112
      %p114 = scmp.eq.s32.totalorder %s25, 0
      %p115 = por %p113, %p114
      %s117 = sadd.s32 %s116, 1
      %p120 = scmp.eq.s32.totalorder %s19, 3
      %p121 = scmp.ne.s32.totalorder %s116, %s118
      %p122 = scmp.eq.s32.totalorder %s19, 0
      %p123 = por %p121, %p122
      %p124 = scmp.ne.s32.totalorder %s116, %s118
      %p125 = scmp.eq.s32.totalorder %s24, 3
      %p126 = por %p124, %p125
      %p127 = scmp.ne.s32.totalorder %s118, %s119
      %p128 = scmp.eq.s32.totalorder %s24, 0
      %p129 = por %p127, %p128
      %p130 = scmp.ne.s32.totalorder %s118, %s119
      %p131 = scmp.eq.s32.totalorder %s25, 3
      %p132 = por %p130, %p131
      %p134 = scmp.ne.s32.totalorder %s119, %s133
      %p135 = scmp.eq.s32.totalorder %s25, 0
      %p136 = por %p134, %p135
      %s137 = ssub.s32 %s19, %s26
      %p138 = scmp.eq.s32.totalorder %s137, 0
      %s140 = sadd.s32 %s139, 1
      %s141 = scalar_select %p138, %s139, %s140
      %p144 = pneg %p138
      %p145 = scmp.eq.s32.totalorder %s19, 3
      %p146 = por %p144, %p145
      %p147 = scmp.ne.s32.totalorder %s139, %s142
      %p148 = scmp.eq.s32.totalorder %s19, 0
      %p149 = por %p147, %p148
      %p150 = scmp.ne.s32.totalorder %s139, %s142
      %p151 = scmp.eq.s32.totalorder %s24, 3
      %p152 = por %p150, %p151
      %p153 = scmp.ne.s32.totalorder %s142, %s143
      %p154 = scmp.eq.s32.totalorder %s24, 0
      %p155 = por %p153, %p154
      %p156 = scmp.ne.s32.totalorder %s142, %s143
      %p157 = scmp.eq.s32.totalorder %s25, 3
      %p158 = por %p156, %p157
      %p160 = scmp.ne.s32.totalorder %s143, %s159
      %p161 = scmp.eq.s32.totalorder %s25, 0
      %p162 = por %p160, %p161
      %p163 = scmp.le.s32.totalorder 1, %s19
      %p164 = scmp.lt.s32.totalorder %s19, 5
      %p165 = pnand %p163, %p164
      %p166 = pneg %p165
      // Predicated region
      $region9: #{tpu_custom_call.1} parent=5 // pred_check
        _
      $region10: #{tpu_custom_call.1} parent=5 // pred_check_branch
        %168 = sbr.rel (%p165) target = $region12
      $region11: #{tpu_custom_call.1} parent=5 // pred_region
        %s169 = ssub.s32 %s19, 1
        // Predicated region
        $region13: #{tpu_custom_call.1} parent=11 // pred_check
          %p170 = pneg %p66
        $region14: #{tpu_custom_call.1} parent=11 // pred_check_branch
          %172 = sbr.rel (%p170) target = $region16
        $region15: #{tpu_custom_call.1} parent=11 // pred_region
          %s174 = ssub.s32 96, 96
          %175 = vsyncadd [#allocation6], %s174
          %s177 = sshll.u32 [#allocation5], 4
          %s178 = int_to_ptr.vmem [resolvable:$true] %s177
          %180 = dma.hbm_to_vmem [thread:$0]  %s1, 96, %s178, [#allocation6]
        $region16: #{tpu_custom_call.1} parent=11 // pred_fallthru
          _
        // Predicated region
        $region17: #{tpu_custom_call.1} parent=11 // pred_check
          %p181 = pneg %p87
        $region18: #{tpu_custom_call.1} parent=11 // pred_check_branch
          %183 = sbr.rel (%p181) target = $region20
        $region19: #{tpu_custom_call.1} parent=11 // pred_region
          %s185 = ssub.s32 96, 96
          %186 = vsyncadd [#allocation6], %s185
          %s188 = sshll.u32 [#allocation7], 4
          %s189 = int_to_ptr.vmem [resolvable:$true] %s188
          %191 = dma.hbm_to_vmem [thread:$0]  %s2, 96, %s189, [#allocation6]
        $region20: #{tpu_custom_call.1} parent=11 // pred_fallthru
          _
        // Predicated region
        $region21: #{tpu_custom_call.1} parent=11 // pred_check
          %p192 = pneg %p108
        $region22: #{tpu_custom_call.1} parent=11 // pred_check_branch
          %194 = sbr.rel (%p192) target = $region24
        $region23: #{tpu_custom_call.1} parent=11 // pred_region
          %s196 = ssub.s32 36864, 36864
          %197 = vsyncadd [#allocation9], %s196
          %s198 = sshll.u32 [#allocation8], 4
          %s199 = int_to_ptr.vmem [resolvable:$true] %s198
          %204 = dma.hbm_to_vmem [thread:$0]  %s3, 36864, %s199, [#allocation9], 384, 384, 24
        $region24: #{tpu_custom_call.1} parent=11 // pred_fallthru
          _
        // Predicated region
        $region25: #{tpu_custom_call.1} parent=11 // pred_check
          %p205 = pneg %p129
        $region26: #{tpu_custom_call.1} parent=11 // pred_check_branch
          %207 = sbr.rel (%p205) target = $region28
        $region27: #{tpu_custom_call.1} parent=11 // pred_region
          %s209 = ssub.s32 96, 96
          %210 = vsyncadd [#allocation9], %s209
          %s212 = sshll.u32 [#allocation10], 4
          %s213 = int_to_ptr.vmem [resolvable:$true] %s212
          %215 = dma.hbm_to_vmem [thread:$0]  %s4, 96, %s213, [#allocation9]
        $region28: #{tpu_custom_call.1} parent=11 // pred_fallthru
          _
      $region12: #{tpu_custom_call.1} parent=5 // pred_fallthru
        _
      %p216 = scmp.lt.s32.totalorder %s19, 4
      // Predicated region
      $region29: #{tpu_custom_call.1} parent=5 // pred_check
        %p217 = pneg %p216
      $region30: #{tpu_custom_call.1} parent=5 // pred_check_branch
        %219 = sbr.rel (%p217) target = $region32
      $region31: #{tpu_custom_call.1} parent=5 // pred_region
        // Predicated region
        $region33: #{tpu_custom_call.1} parent=31 // pred_check
          %p220 = pneg %p39
        $region34: #{tpu_custom_call.1} parent=31 // pred_check_branch
          %222 = sbr.rel (%p220) target = $region36
        $region35: #{tpu_custom_call.1} parent=31 // pred_region
          %s223 = sand.u32 %s29, 1
          %s224 = scalar_lea.sflag [#allocation3], %s223
          %s225 = sand.u32 %s29, 1
          %s226 = smul.addr %s225, 384
          %s227 = scalar_lea.vmem [#allocation2], %s226
          %s228 = smul.u32 8, %s19
          %s230 = ssub.s32 6144, 6144
          %231 = vsyncadd %s224, %s230
          %s232 = smul.addr %s228, 6
          %s233 = smul.addr %s232, 128
          %s234 = scalar_lea.hbm %s0, %s233
          %s235 = sshll.u32 %s227, 4
          %s236 = int_to_ptr.vmem [resolvable:$true] %s235
          %241 = dma.hbm_to_vmem [thread:$0]  %s234, 6144, %s236, %s224, 768, 768, 48
        $region36: #{tpu_custom_call.1} parent=31 // pred_fallthru
          _
      $region32: #{tpu_custom_call.1} parent=5 // pred_fallthru
        _
      %p242 = scmp.le.s32.totalorder 1, %s19
      %p243 = scmp.lt.s32.totalorder %s19, 5
      %p244 = pnand %p242, %p243
      %p245 = pneg %p244
      // Predicated region
      $region37: #{tpu_custom_call.1} parent=5 // pred_check
        _
      $region38: #{tpu_custom_call.1} parent=5 // pred_check_branch
        %247 = sbr.rel (%p244) target = $region40
      $region39: #{tpu_custom_call.1} parent=5 // pred_region
        %s248 = ssub.s32 %s19, 1
        %s249 = sand.u32 %s32, 1
        %s250 = scalar_lea.sflag [#allocation3], %s249
        %s251 = sand.u32 %s32, 1
        %s252 = smul.addr %s251, 384
        %s253 = scalar_lea.vmem [#allocation2], %s252
        // Predicated region
        $region41: #{tpu_custom_call.1} parent=39 // pred_check
          %p254 = pneg %p45
        $region42: #{tpu_custom_call.1} parent=39 // pred_check_branch
          %256 = sbr.rel (%p254) target = $region44
        $region43: #{tpu_custom_call.1} parent=39 // pred_region
          %257 = dma.done %s250, 6144
        $region44: #{tpu_custom_call.1} parent=39 // pred_fallthru
          _
        // Predicated region
        $region45: #{tpu_custom_call.1} parent=39 // pred_check
          %p258 = pneg %p66
        $region46: #{tpu_custom_call.1} parent=39 // pred_check_branch
          %260 = sbr.rel (%p258) target = $region48
        $region47: #{tpu_custom_call.1} parent=39 // pred_region
          %261 = dma.done [#allocation6], 96
        $region48: #{tpu_custom_call.1} parent=39 // pred_fallthru
          _
        // Predicated region
        $region49: #{tpu_custom_call.1} parent=39 // pred_check
          %p262 = pneg %p87
        $region50: #{tpu_custom_call.1} parent=39 // pred_check_branch
          %264 = sbr.rel (%p262) target = $region52
        $region51: #{tpu_custom_call.1} parent=39 // pred_region
          %265 = dma.done [#allocation6], 96
        $region52: #{tpu_custom_call.1} parent=39 // pred_fallthru
          _
        // Predicated region
        $region53: #{tpu_custom_call.1} parent=39 // pred_check
          %p266 = pneg %p108
        $region54: #{tpu_custom_call.1} parent=39 // pred_check_branch
          %268 = sbr.rel (%p266) target = $region56
        $region55: #{tpu_custom_call.1} parent=39 // pred_region
          %269 = dma.done [#allocation9], 36864
        $region56: #{tpu_custom_call.1} parent=39 // pred_fallthru
          _
        // Predicated region
        $region57: #{tpu_custom_call.1} parent=39 // pred_check
          %p270 = pneg %p129
        $region58: #{tpu_custom_call.1} parent=39 // pred_check_branch
          %272 = sbr.rel (%p270) target = $region60
        $region59: #{tpu_custom_call.1} parent=39 // pred_region
          %273 = dma.done [#allocation9], 96
        $region60: #{tpu_custom_call.1} parent=39 // pred_fallthru
          _
        %s274 = sand.u32 %s32, 1
        %s275 = scalar_lea.sflag [#allocation3], %s274
        %s276 = sand.u32 %s32, 1
        %s277 = smul.addr %s276, 384
        %s278 = scalar_lea.vmem [#allocation2], %s277
        %p279 = pneg %p45
        %p280 = pneg %p42
        %p281 = pneg %p66
        %p282 = pneg %p63
        %p283 = pneg %p87
        %p284 = pneg %p84
        %p285 = pneg %p108
        %p286 = pneg %p105
        %p287 = pneg %p129
        %p288 = pneg %p126
        %p289 = pneg %p155
        %p290 = pneg %p152
        %s291 = sand.u32 %s142, 1
        %s292 = scalar_lea.sflag [#allocation4], %s291
        %s293 = sand.u32 %s142, 1
        %s294 = smul.addr %s293, 384
        %s295 = scalar_lea.vmem [#allocation11], %s294
        %s296 = smul.u32 8, %s24
        %s297 = smul.u32 8, %s24
        %v298 = vld [vmem:[%s253] sm:$0xff]
        %v299 = vld [vmem:[%s253 + $0x8] sm:$0xff]
        %v300 = vld [vmem:[%s253 + $0x10] sm:$0xff]
        %v301 = vld [vmem:[%s253 + $0x18] sm:$0xff]
        %v302 = vld [vmem:[%s253 + $0x20] sm:$0xff]
        %v303 = vld [vmem:[%s253 + $0x28] sm:$0xff]
        %v304 = vld [vmem:[%s253 + $0x30] sm:$0xff]
        %v305 = vld [vmem:[%s253 + $0x38] sm:$0xff]
        %v306 = vld [vmem:[%s253 + $0x40] sm:$0xff]
        %v307 = vld [vmem:[%s253 + $0x48] sm:$0xff]
        %v308 = vld [vmem:[%s253 + $0x50] sm:$0xff]
        %v309 = vld [vmem:[%s253 + $0x58] sm:$0xff]
        %v310 = vld [vmem:[%s253 + $0x60] sm:$0xff]
        %v311 = vld [vmem:[%s253 + $0x68] sm:$0xff]
        %v312 = vld [vmem:[%s253 + $0x70] sm:$0xff]
        %v313 = vld [vmem:[%s253 + $0x78] sm:$0xff]
        %v314 = vld [vmem:[%s253 + $0x80] sm:$0xff]
        %v315 = vld [vmem:[%s253 + $0x88] sm:$0xff]
        %v316 = vld [vmem:[%s253 + $0x90] sm:$0xff]
        %v317 = vld [vmem:[%s253 + $0x98] sm:$0xff]
        %v318 = vld [vmem:[%s253 + $0xa0] sm:$0xff]
        %v319 = vld [vmem:[%s253 + $0xa8] sm:$0xff]
        %v320 = vld [vmem:[%s253 + $0xb0] sm:$0xff]
        %v321 = vld [vmem:[%s253 + $0xb8] sm:$0xff]
        %v322 = vld [vmem:[%s253 + $0xc0] sm:$0xff]
        %v323 = vld [vmem:[%s253 + $0xc8] sm:$0xff]
        %v324 = vld [vmem:[%s253 + $0xd0] sm:$0xff]
        %v325 = vld [vmem:[%s253 + $0xd8] sm:$0xff]
        %v326 = vld [vmem:[%s253 + $0xe0] sm:$0xff]
        %v327 = vld [vmem:[%s253 + $0xe8] sm:$0xff]
        %v328 = vld [vmem:[%s253 + $0xf0] sm:$0xff]
        %v329 = vld [vmem:[%s253 + $0xf8] sm:$0xff]
        %v330 = vld [vmem:[%s253 + $0x100] sm:$0xff]
        %v331 = vld [vmem:[%s253 + $0x108] sm:$0xff]
        %v332 = vld [vmem:[%s253 + $0x110] sm:$0xff]
        %v333 = vld [vmem:[%s253 + $0x118] sm:$0xff]
        %v334 = vld [vmem:[%s253 + $0x120] sm:$0xff]
        %v335 = vld [vmem:[%s253 + $0x128] sm:$0xff]
        %v336 = vld [vmem:[%s253 + $0x130] sm:$0xff]
        %v337 = vld [vmem:[%s253 + $0x138] sm:$0xff]
        %v338 = vld [vmem:[%s253 + $0x140] sm:$0xff]
        %v339 = vld [vmem:[%s253 + $0x148] sm:$0xff]
        %v340 = vld [vmem:[%s253 + $0x150] sm:$0xff]
        %v341 = vld [vmem:[%s253 + $0x158] sm:$0xff]
        %v342 = vld [vmem:[%s253 + $0x160] sm:$0xff]
        %v343 = vld [vmem:[%s253 + $0x168] sm:$0xff]
        %v344 = vld [vmem:[%s253 + $0x170] sm:$0xff]
        %v345 = vld [vmem:[%s253 + $0x178] sm:$0xff]
        %v346 = vadd.f32 %v298, %v299
        %v347 = vadd.f32 %v346, %v300
        %v348 = vadd.f32 %v347, %v301
        %v349 = vadd.f32 %v348, %v302
        %v350 = vadd.f32 %v349, %v303
        %351 = vadd.xlane.f32.xlu0 %v350
        %v352 = vpop.xlane.xlu0 %351
        %v353 = vadd.f32 %v304, %v305
        %v354 = vadd.f32 %v353, %v306
        %v355 = vadd.f32 %v354, %v307
        %v356 = vadd.f32 %v355, %v308
        %v357 = vadd.f32 %v356, %v309
        %358 = vadd.xlane.f32.xlu0 %v357
        %v359 = vpop.xlane.xlu0 %358
        %v360 = vadd.f32 %v310, %v311
        %v361 = vadd.f32 %v360, %v312
        %v362 = vadd.f32 %v361, %v313
        %v363 = vadd.f32 %v362, %v314
        %v364 = vadd.f32 %v363, %v315
        %365 = vadd.xlane.f32.xlu0 %v364
        %v366 = vpop.xlane.xlu0 %365
        %v367 = vadd.f32 %v316, %v317
        %v368 = vadd.f32 %v367, %v318
        %v369 = vadd.f32 %v368, %v319
        %v370 = vadd.f32 %v369, %v320
        %v371 = vadd.f32 %v370, %v321
        %372 = vadd.xlane.f32.xlu0 %v371
        %v373 = vpop.xlane.xlu0 %372
        %v374 = vadd.f32 %v322, %v323
        %v375 = vadd.f32 %v374, %v324
        %v376 = vadd.f32 %v375, %v325
        %v377 = vadd.f32 %v376, %v326
        %v378 = vadd.f32 %v377, %v327
        %379 = vadd.xlane.f32.xlu0 %v378
        %v380 = vpop.xlane.xlu0 %379
        %v381 = vadd.f32 %v328, %v329
        %v382 = vadd.f32 %v381, %v330
        %v383 = vadd.f32 %v382, %v331
        %v384 = vadd.f32 %v383, %v332
        %v385 = vadd.f32 %v384, %v333
        %386 = vadd.xlane.f32.xlu0 %v385
        %v387 = vpop.xlane.xlu0 %386
        %v388 = vadd.f32 %v334, %v335
        %v389 = vadd.f32 %v388, %v336
        %v390 = vadd.f32 %v389, %v337
        %v391 = vadd.f32 %v390, %v338
        %v392 = vadd.f32 %v391, %v339
        %393 = vadd.xlane.f32.xlu0 %v392
        %v394 = vpop.xlane.xlu0 %393
        %v395 = vadd.f32 %v340, %v341
        %v396 = vadd.f32 %v395, %v342
        %v397 = vadd.f32 %v396, %v343
        %v398 = vadd.f32 %v397, %v344
        %v399 = vadd.f32 %v398, %v345
        %400 = vadd.xlane.f32.xlu0 %v399
        %v401 = vpop.xlane.xlu0 %400
        %v402 = vrcp.pop 768.0
        %v403 = vmul.f32 %v352, %v402
        %v404 = vmul.f32 %v359, %v402
        %v405 = vmul.f32 %v366, %v402
        %v406 = vmul.f32 %v373, %v402
        %v407 = vmul.f32 %v380, %v402
        %v408 = vmul.f32 %v387, %v402
        %v409 = vmul.f32 %v394, %v402
        %v410 = vmul.f32 %v401, %v402
        %v411 = vsub.f32 %v298, %v403
        %v412 = vsub.f32 %v299, %v403
        %v413 = vsub.f32 %v300, %v403
        %v414 = vsub.f32 %v301, %v403
        %v415 = vsub.f32 %v302, %v403
        %v416 = vsub.f32 %v303, %v403
        %v417 = vsub.f32 %v304, %v404
        %v418 = vsub.f32 %v305, %v404
        %v419 = vsub.f32 %v306, %v404
        %v420 = vsub.f32 %v307, %v404
        %v421 = vsub.f32 %v308, %v404
        %v422 = vsub.f32 %v309, %v404
        %v423 = vsub.f32 %v310, %v405
        %v424 = vsub.f32 %v311, %v405
        %v425 = vsub.f32 %v312, %v405
        %v426 = vsub.f32 %v313, %v405
        %v427 = vsub.f32 %v314, %v405
        %v428 = vsub.f32 %v315, %v405
        %v429 = vsub.f32 %v316, %v406
        %v430 = vsub.f32 %v317, %v406
        %v431 = vsub.f32 %v318, %v406
        %v432 = vsub.f32 %v319, %v406
        %v433 = vsub.f32 %v320, %v406
        %v434 = vsub.f32 %v321, %v406
        %v435 = vsub.f32 %v322, %v407
        %v436 = vsub.f32 %v323, %v407
        %v437 = vsub.f32 %v324, %v407
        %v438 = vsub.f32 %v325, %v407
        %v439 = vsub.f32 %v326, %v407
        %v440 = vsub.f32 %v327, %v407
        %v441 = vsub.f32 %v328, %v408
        %v442 = vsub.f32 %v329, %v408
        %v443 = vsub.f32 %v330, %v408
        %v444 = vsub.f32 %v331, %v408
        %v445 = vsub.f32 %v332, %v408
        %v446 = vsub.f32 %v333, %v408
        %v447 = vsub.f32 %v334, %v409
        %v448 = vsub.f32 %v335, %v409
        %v449 = vsub.f32 %v336, %v409
        %v450 = vsub.f32 %v337, %v409
        %v451 = vsub.f32 %v338, %v409
        %v452 = vsub.f32 %v339, %v409
        %v453 = vsub.f32 %v340, %v410
        %v454 = vsub.f32 %v341, %v410
        %v455 = vsub.f32 %v342, %v410
        %v456 = vsub.f32 %v343, %v410
        %v457 = vsub.f32 %v344, %v410
        %v458 = vsub.f32 %v345, %v410
        %v459 = vmul.f32 %v411, %v411
        %v460 = vmul.f32 %v412, %v412
        %v461 = vmul.f32 %v413, %v413
        %v462 = vmul.f32 %v414, %v414
        %v463 = vmul.f32 %v415, %v415
        %v464 = vmul.f32 %v416, %v416
        %v465 = vmul.f32 %v417, %v417
        %v466 = vmul.f32 %v418, %v418
        %v467 = vmul.f32 %v419, %v419
        %v468 = vmul.f32 %v420, %v420
        %v469 = vmul.f32 %v421, %v421
        %v470 = vmul.f32 %v422, %v422
        %v471 = vmul.f32 %v423, %v423
        %v472 = vmul.f32 %v424, %v424
        %v473 = vmul.f32 %v425, %v425
        %v474 = vmul.f32 %v426, %v426
        %v475 = vmul.f32 %v427, %v427
        %v476 = vmul.f32 %v428, %v428
        %v477 = vmul.f32 %v429, %v429
        %v478 = vmul.f32 %v430, %v430
        %v479 = vmul.f32 %v431, %v431
        %v480 = vmul.f32 %v432, %v432
        %v481 = vmul.f32 %v433, %v433
        %v482 = vmul.f32 %v434, %v434
        %v483 = vmul.f32 %v435, %v435
        %v484 = vmul.f32 %v436, %v436
        %v485 = vmul.f32 %v437, %v437
        %v486 = vmul.f32 %v438, %v438
        %v487 = vmul.f32 %v439, %v439
        %v488 = vmul.f32 %v440, %v440
        %v489 = vmul.f32 %v441, %v441
        %v490 = vmul.f32 %v442, %v442
        %v491 = vmul.f32 %v443, %v443
        %v492 = vmul.f32 %v444, %v444
        %v493 = vmul.f32 %v445, %v445
        %v494 = vmul.f32 %v446, %v446
        %v495 = vmul.f32 %v447, %v447
        %v496 = vmul.f32 %v448, %v448
        %v497 = vmul.f32 %v449, %v449
        %v498 = vmul.f32 %v450, %v450
        %v499 = vmul.f32 %v451, %v451
        %v500 = vmul.f32 %v452, %v452
        %v501 = vmul.f32 %v453, %v453
        %v502 = vmul.f32 %v454, %v454
        %v503 = vmul.f32 %v455, %v455
        %v504 = vmul.f32 %v456, %v456
        %v505 = vmul.f32 %v457, %v457
        %v506 = vmul.f32 %v458, %v458
        %v507 = vadd.f32 %v459, %v460
        %v508 = vadd.f32 %v507, %v461
        %v509 = vadd.f32 %v508, %v462
        %v510 = vadd.f32 %v509, %v463
        %v511 = vadd.f32 %v510, %v464
        %512 = vadd.xlane.f32.xlu0 %v511
        %v513 = vpop.xlane.xlu0 %512
        %v514 = vadd.f32 %v465, %v466
        %v515 = vadd.f32 %v514, %v467
        %v516 = vadd.f32 %v515, %v468
        %v517 = vadd.f32 %v516, %v469
        %v518 = vadd.f32 %v517, %v470
        %519 = vadd.xlane.f32.xlu0 %v518
        %v520 = vpop.xlane.xlu0 %519
        %v521 = vadd.f32 %v471, %v472
        %v522 = vadd.f32 %v521, %v473
        %v523 = vadd.f32 %v522, %v474
        %v524 = vadd.f32 %v523, %v475
        %v525 = vadd.f32 %v524, %v476
        %526 = vadd.xlane.f32.xlu0 %v525
        %v527 = vpop.xlane.xlu0 %526
        %v528 = vadd.f32 %v477, %v478
        %v529 = vadd.f32 %v528, %v479
        %v530 = vadd.f32 %v529, %v480
        %v531 = vadd.f32 %v530, %v481
        %v532 = vadd.f32 %v531, %v482
        %533 = vadd.xlane.f32.xlu0 %v532
        %v534 = vpop.xlane.xlu0 %533
        %v535 = vadd.f32 %v483, %v484
        %v536 = vadd.f32 %v535, %v485
        %v537 = vadd.f32 %v536, %v486
        %v538 = vadd.f32 %v537, %v487
        %v539 = vadd.f32 %v538, %v488
        %540 = vadd.xlane.f32.xlu0 %v539
        %v541 = vpop.xlane.xlu0 %540
        %v542 = vadd.f32 %v489, %v490
        %v543 = vadd.f32 %v542, %v491
        %v544 = vadd.f32 %v543, %v492
        %v545 = vadd.f32 %v544, %v493
        %v546 = vadd.f32 %v545, %v494
        %547 = vadd.xlane.f32.xlu0 %v546
        %v548 = vpop.xlane.xlu0 %547
        %v549 = vadd.f32 %v495, %v496
        %v550 = vadd.f32 %v549, %v497
        %v551 = vadd.f32 %v550, %v498
        %v552 = vadd.f32 %v551, %v499
        %v553 = vadd.f32 %v552, %v500
        %554 = vadd.xlane.f32.xlu0 %v553
        %v555 = vpop.xlane.xlu0 %554
        %v556 = vadd.f32 %v501, %v502
        %v557 = vadd.f32 %v556, %v503
        %v558 = vadd.f32 %v557, %v504
        %v559 = vadd.f32 %v558, %v505
        %v560 = vadd.f32 %v559, %v506
        %561 = vadd.xlane.f32.xlu0 %v560
        %v562 = vpop.xlane.xlu0 %561
        %v563 = vmul.f32 %v513, 0.0013037809
        %v564 = vmul.f32 %v520, 0.0013037809
        %v565 = vmul.f32 %v527, 0.0013037809
        %v566 = vmul.f32 %v534, 0.0013037809
        %v567 = vmul.f32 %v541, 0.0013037809
        %v568 = vmul.f32 %v548, 0.0013037809
        %v569 = vmul.f32 %v555, 0.0013037809
        %v570 = vmul.f32 %v562, 0.0013037809
        %v571 = vrsqrt.pop %v563
        %v572 = vmul.f32 %v563, %v571
        %vm573 = vcmp.eq.f32.partialorder %v563, inf
        %v574 = vsel %vm573, %v563, %v572
        %vm575 = vcmp.eq.f32.partialorder %v563, 0.0
        %v576 = vand.u32 %v563, 2147483648
        %v577 = vsel %vm575, %v576, %v574
        %v578 = vrsqrt.pop %v564
        %v579 = vmul.f32 %v564, %v578
        %vm580 = vcmp.eq.f32.partialorder %v564, inf
        %v581 = vsel %vm580, %v564, %v579
        %vm582 = vcmp.eq.f32.partialorder %v564, 0.0
        %v583 = vand.u32 %v564, 2147483648
        %v584 = vsel %vm582, %v583, %v581
        %v585 = vrsqrt.pop %v565
        %v586 = vmul.f32 %v565, %v585
        %vm587 = vcmp.eq.f32.partialorder %v565, inf
        %v588 = vsel %vm587, %v565, %v586
        %vm589 = vcmp.eq.f32.partialorder %v565, 0.0
        %v590 = vand.u32 %v565, 2147483648
        %v591 = vsel %vm589, %v590, %v588
        %v592 = vrsqrt.pop %v566
        %v593 = vmul.f32 %v566, %v592
        %vm594 = vcmp.eq.f32.partialorder %v566, inf
        %v595 = vsel %vm594, %v566, %v593
        %vm596 = vcmp.eq.f32.partialorder %v566, 0.0
        %v597 = vand.u32 %v566, 2147483648
        %v598 = vsel %vm596, %v597, %v595
        %v599 = vrsqrt.pop %v567
        %v600 = vmul.f32 %v567, %v599
        %vm601 = vcmp.eq.f32.partialorder %v567, inf
        %v602 = vsel %vm601, %v567, %v600
        %vm603 = vcmp.eq.f32.partialorder %v567, 0.0
        %v604 = vand.u32 %v567, 2147483648
        %v605 = vsel %vm603, %v604, %v602
        %v606 = vrsqrt.pop %v568
        %v607 = vmul.f32 %v568, %v606
        %vm608 = vcmp.eq.f32.partialorder %v568, inf
        %v609 = vsel %vm608, %v568, %v607
        %vm610 = vcmp.eq.f32.partialorder %v568, 0.0
        %v611 = vand.u32 %v568, 2147483648
        %v612 = vsel %vm610, %v611, %v609
        %v613 = vrsqrt.pop %v569
        %v614 = vmul.f32 %v569, %v613
        %vm615 = vcmp.eq.f32.partialorder %v569, inf
        %v616 = vsel %vm615, %v569, %v614
        %vm617 = vcmp.eq.f32.partialorder %v569, 0.0
        %v618 = vand.u32 %v569, 2147483648
        %v619 = vsel %vm617, %v618, %v616
        %v620 = vrsqrt.pop %v570
        %v621 = vmul.f32 %v570, %v620
        %vm622 = vcmp.eq.f32.partialorder %v570, inf
        %v623 = vsel %vm622, %v570, %v621
        %vm624 = vcmp.eq.f32.partialorder %v570, 0.0
        %v625 = vand.u32 %v570, 2147483648
        %v626 = vsel %vm624, %v625, %v623
        %v627 = vadd.f32 %v577, 1e-06
        %v628 = vadd.f32 %v584, 1e-06
        %v629 = vadd.f32 %v591, 1e-06
        %v630 = vadd.f32 %v598, 1e-06
        %v631 = vadd.f32 %v605, 1e-06
        %v632 = vadd.f32 %v612, 1e-06
        %v633 = vadd.f32 %v619, 1e-06
        %v634 = vadd.f32 %v626, 1e-06
        %v635 = vrcp.pop %v627
        %v636 = vrcp.pop %v628
        %v637 = vrcp.pop %v629
        %v638 = vrcp.pop %v630
        %v639 = vrcp.pop %v631
        %v640 = vrcp.pop %v632
        %v641 = vrcp.pop %v633
        %v642 = vrcp.pop %v634
        %v643 = vld [vmem:[#allocation5] sm:$0x3f]
        %v644 = vmul.f32 %v411, %v635
        %v645 = vmul.f32 %v412, %v635
        %v646 = vmul.f32 %v413, %v635
        %v647 = vmul.f32 %v414, %v635
        %v648 = vmul.f32 %v415, %v635
        %v649 = vmul.f32 %v416, %v635
        %v650 = vmul.f32 %v417, %v636
        %v651 = vmul.f32 %v418, %v636
        %v652 = vmul.f32 %v419, %v636
        %v653 = vmul.f32 %v420, %v636
        %v654 = vmul.f32 %v421, %v636
        %v655 = vmul.f32 %v422, %v636
        %v656 = vmul.f32 %v423, %v637
        %v657 = vmul.f32 %v424, %v637
        %v658 = vmul.f32 %v425, %v637
        %v659 = vmul.f32 %v426, %v637
        %v660 = vmul.f32 %v427, %v637
        %v661 = vmul.f32 %v428, %v637
        %v662 = vmul.f32 %v429, %v638
        %v663 = vmul.f32 %v430, %v638
        %v664 = vmul.f32 %v431, %v638
        %v665 = vmul.f32 %v432, %v638
        %v666 = vmul.f32 %v433, %v638
        %v667 = vmul.f32 %v434, %v638
        %v668 = vmul.f32 %v435, %v639
        %v669 = vmul.f32 %v436, %v639
        %v670 = vmul.f32 %v437, %v639
        %v671 = vmul.f32 %v438, %v639
        %v672 = vmul.f32 %v439, %v639
        %v673 = vmul.f32 %v440, %v639
        %v674 = vmul.f32 %v441, %v640
        %v675 = vmul.f32 %v442, %v640
        %v676 = vmul.f32 %v443, %v640
        %v677 = vmul.f32 %v444, %v640
        %v678 = vmul.f32 %v445, %v640
        %v679 = vmul.f32 %v446, %v640
        %v680 = vmul.f32 %v447, %v641
        %v681 = vmul.f32 %v448, %v641
        %v682 = vmul.f32 %v449, %v641
        %v683 = vmul.f32 %v450, %v641
        %v684 = vmul.f32 %v451, %v641
        %v685 = vmul.f32 %v452, %v641
        %v686 = vmul.f32 %v453, %v642
        %v687 = vmul.f32 %v454, %v642
        %v688 = vmul.f32 %v455, %v642
        %v689 = vmul.f32 %v456, %v642
        %v690 = vmul.f32 %v457, %v642
        %v691 = vmul.f32 %v458, %v642
        %v693 = vlaneseq
        %v694 = vshrl.u32 %v693, 7
        %v695 = vsub.s32 0, %v694
        %v696 = vrot.slane %v643, %v695
        %v697 = vlaneseq
        %v698 = vshrl.u32 %v697, 7
        %v699 = vsub.s32 1, %v698
        %v700 = vrot.slane %v643, %v699
        %v701 = vlaneseq
        %v702 = vshrl.u32 %v701, 7
        %v703 = vsub.s32 2, %v702
        %v704 = vrot.slane %v643, %v703
        %v705 = vlaneseq
        %v706 = vshrl.u32 %v705, 7
        %v707 = vsub.s32 3, %v706
        %v708 = vrot.slane %v643, %v707
        %v709 = vlaneseq
        %v710 = vshrl.u32 %v709, 7
        %v711 = vsub.s32 4, %v710
        %v712 = vrot.slane %v643, %v711
        %v713 = vlaneseq
        %v714 = vshrl.u32 %v713, 7
        %v715 = vsub.s32 5, %v714
        %v716 = vrot.slane %v643, %v715
        %v723 = vmul.f32 %v696, %v644
        %v724 = vmul.f32 %v700, %v645
        %v725 = vmul.f32 %v704, %v646
        %v726 = vmul.f32 %v708, %v647
        %v727 = vmul.f32 %v712, %v648
        %v728 = vmul.f32 %v716, %v649
        %v729 = vmul.f32 %v696, %v650
        %v730 = vmul.f32 %v700, %v651
        %v731 = vmul.f32 %v704, %v652
        %v732 = vmul.f32 %v708, %v653
        %v733 = vmul.f32 %v712, %v654
        %v734 = vmul.f32 %v716, %v655
        %v735 = vmul.f32 %v696, %v656
        %v736 = vmul.f32 %v700, %v657
        %v737 = vmul.f32 %v704, %v658
        %v738 = vmul.f32 %v708, %v659
        %v739 = vmul.f32 %v712, %v660
        %v740 = vmul.f32 %v716, %v661
        %v741 = vmul.f32 %v696, %v662
        %v742 = vmul.f32 %v700, %v663
        %v743 = vmul.f32 %v704, %v664
        %v744 = vmul.f32 %v708, %v665
        %v745 = vmul.f32 %v712, %v666
        %v746 = vmul.f32 %v716, %v667
        %v747 = vmul.f32 %v696, %v668
        %v748 = vmul.f32 %v700, %v669
        %v749 = vmul.f32 %v704, %v670
        %v750 = vmul.f32 %v708, %v671
        %v751 = vmul.f32 %v712, %v672
        %v752 = vmul.f32 %v716, %v673
        %v753 = vmul.f32 %v696, %v674
        %v754 = vmul.f32 %v700, %v675
        %v755 = vmul.f32 %v704, %v676
        %v756 = vmul.f32 %v708, %v677
        %v757 = vmul.f32 %v712, %v678
        %v758 = vmul.f32 %v716, %v679
        %v759 = vmul.f32 %v696, %v680
        %v760 = vmul.f32 %v700, %v681
        %v761 = vmul.f32 %v704, %v682
        %v762 = vmul.f32 %v708, %v683
        %v763 = vmul.f32 %v712, %v684
        %v764 = vmul.f32 %v716, %v685
        %v765 = vmul.f32 %v696, %v686
        %v766 = vmul.f32 %v700, %v687
        %v767 = vmul.f32 %v704, %v688
        %v768 = vmul.f32 %v708, %v689
        %v769 = vmul.f32 %v712, %v690
        %v770 = vmul.f32 %v716, %v691
        %v771 = vld [vmem:[#allocation7] sm:$0x3f]
        %v773 = vlaneseq
        %v774 = vshrl.u32 %v773, 7
        %v775 = vsub.s32 0, %v774
        %v776 = vrot.slane %v771, %v775
        %v777 = vlaneseq
        %v778 = vshrl.u32 %v777, 7
        %v779 = vsub.s32 1, %v778
        %v780 = vrot.slane %v771, %v779
        %v781 = vlaneseq
        %v782 = vshrl.u32 %v781, 7
        %v783 = vsub.s32 2, %v782
        %v784 = vrot.slane %v771, %v783
        %v785 = vlaneseq
        %v786 = vshrl.u32 %v785, 7
        %v787 = vsub.s32 3, %v786
        %v788 = vrot.slane %v771, %v787
        %v789 = vlaneseq
        %v790 = vshrl.u32 %v789, 7
        %v791 = vsub.s32 4, %v790
        %v792 = vrot.slane %v771, %v791
        %v793 = vlaneseq
        %v794 = vshrl.u32 %v793, 7
        %v795 = vsub.s32 5, %v794
        %v796 = vrot.slane %v771, %v795
        %v803 = vadd.f32 %v723, %v776
        %v804 = vadd.f32 %v724, %v780
        %v805 = vadd.f32 %v725, %v784
        %v806 = vadd.f32 %v726, %v788
        %v807 = vadd.f32 %v727, %v792
        %v808 = vadd.f32 %v728, %v796
        %v809 = vadd.f32 %v729, %v776
        %v810 = vadd.f32 %v730, %v780
        %v811 = vadd.f32 %v731, %v784
        %v812 = vadd.f32 %v732, %v788
        %v813 = vadd.f32 %v733, %v792
        %v814 = vadd.f32 %v734, %v796
        %v815 = vadd.f32 %v735, %v776
        %v816 = vadd.f32 %v736, %v780
        %v817 = vadd.f32 %v737, %v784
        %v818 = vadd.f32 %v738, %v788
        %v819 = vadd.f32 %v739, %v792
        %v820 = vadd.f32 %v740, %v796
        %v821 = vadd.f32 %v741, %v776
        %v822 = vadd.f32 %v742, %v780
        %v823 = vadd.f32 %v743, %v784
        %v824 = vadd.f32 %v744, %v788
        %v825 = vadd.f32 %v745, %v792
        %v826 = vadd.f32 %v746, %v796
        %v827 = vadd.f32 %v747, %v776
        %v828 = vadd.f32 %v748, %v780
        %v829 = vadd.f32 %v749, %v784
        %v830 = vadd.f32 %v750, %v788
        %v831 = vadd.f32 %v751, %v792
        %v832 = vadd.f32 %v752, %v796
        %v833 = vadd.f32 %v753, %v776
        %v834 = vadd.f32 %v754, %v780
        %v835 = vadd.f32 %v755, %v784
        %v836 = vadd.f32 %v756, %v788
        %v837 = vadd.f32 %v757, %v792
        %v838 = vadd.f32 %v758, %v796
        %v839 = vadd.f32 %v759, %v776
        %v840 = vadd.f32 %v760, %v780
        %v841 = vadd.f32 %v761, %v784
        %v842 = vadd.f32 %v762, %v788
        %v843 = vadd.f32 %v763, %v792
        %v844 = vadd.f32 %v764, %v796
        %v845 = vadd.f32 %v765, %v776
        %v846 = vadd.f32 %v766, %v780
        %v847 = vadd.f32 %v767, %v784
        %v848 = vadd.f32 %v768, %v788
        %v849 = vadd.f32 %v769, %v792
        %v850 = vadd.f32 %v770, %v796
        %v851 = vpack.c.bf16 %v809, %v803
        %v852 = vpack.c.bf16 %v810, %v804
        %v853 = vpack.c.bf16 %v811, %v805
        %v854 = vpack.c.bf16 %v812, %v806
        %v855 = vpack.c.bf16 %v813, %v807
        %v856 = vpack.c.bf16 %v814, %v808
        %v857 = vpack.c.bf16 %v821, %v815
        %v858 = vpack.c.bf16 %v822, %v816
        %v859 = vpack.c.bf16 %v823, %v817
        %v860 = vpack.c.bf16 %v824, %v818
        %v861 = vpack.c.bf16 %v825, %v819
        %v862 = vpack.c.bf16 %v826, %v820
        %v863 = vpack.c.bf16 %v833, %v827
        %v864 = vpack.c.bf16 %v834, %v828
        %v865 = vpack.c.bf16 %v835, %v829
        %v866 = vpack.c.bf16 %v836, %v830
        %v867 = vpack.c.bf16 %v837, %v831
        %v868 = vpack.c.bf16 %v838, %v832
        %v869 = vpack.c.bf16 %v845, %v839
        %v870 = vpack.c.bf16 %v846, %v840
        %v871 = vpack.c.bf16 %v847, %v841
        %v872 = vpack.c.bf16 %v848, %v842
        %v873 = vpack.c.bf16 %v849, %v843
        %v874 = vpack.c.bf16 %v850, %v844
        %v875 = vld [vmem:[#allocation8] sm:$0xff]
        %v876 = vld [vmem:[#allocation8 + $0x8] sm:$0xff]
        %v877 = vld [vmem:[#allocation8 + $0x10] sm:$0xff]
        %v878 = vld [vmem:[#allocation8 + $0x18] sm:$0xff]
        %v879 = vld [vmem:[#allocation8 + $0x20] sm:$0xff]
        %v880 = vld [vmem:[#allocation8 + $0x28] sm:$0xff]
        %v881 = vld [vmem:[#allocation8 + $0x30] sm:$0xff]
        %v882 = vld [vmem:[#allocation8 + $0x38] sm:$0xff]
        %v883 = vld [vmem:[#allocation8 + $0x40] sm:$0xff]
        %v884 = vld [vmem:[#allocation8 + $0x48] sm:$0xff]
        %v885 = vld [vmem:[#allocation8 + $0x50] sm:$0xff]
        %v886 = vld [vmem:[#allocation8 + $0x58] sm:$0xff]
        %v887 = vld [vmem:[#allocation8 + $0x60] sm:$0xff]
        %v888 = vld [vmem:[#allocation8 + $0x68] sm:$0xff]
        %v889 = vld [vmem:[#allocation8 + $0x70] sm:$0xff]
        %v890 = vld [vmem:[#allocation8 + $0x78] sm:$0xff]
        %v891 = vld [vmem:[#allocation8 + $0x80] sm:$0xff]
        %v892 = vld [vmem:[#allocation8 + $0x88] sm:$0xff]
        %v893 = vld [vmem:[#allocation8 + $0x90] sm:$0xff]
        %v894 = vld [vmem:[#allocation8 + $0x98] sm:$0xff]
        %v895 = vld [vmem:[#allocation8 + $0xa0] sm:$0xff]
        %v896 = vld [vmem:[#allocation8 + $0xa8] sm:$0xff]
        %v897 = vld [vmem:[#allocation8 + $0xb0] sm:$0xff]
        %v898 = vld [vmem:[#allocation8 + $0xb8] sm:$0xff]
        %v899 = vld [vmem:[#allocation8 + $0xc0] sm:$0xff]
        %v900 = vld [vmem:[#allocation8 + $0xc8] sm:$0xff]
        %v901 = vld [vmem:[#allocation8 + $0xd0] sm:$0xff]
        %v902 = vld [vmem:[#allocation8 + $0xd8] sm:$0xff]
        %v903 = vld [vmem:[#allocation8 + $0xe0] sm:$0xff]
        %v904 = vld [vmem:[#allocation8 + $0xe8] sm:$0xff]
        %v905 = vld [vmem:[#allocation8 + $0xf0] sm:$0xff]
        %v906 = vld [vmem:[#allocation8 + $0xf8] sm:$0xff]
        %v907 = vld [vmem:[#allocation8 + $0x100] sm:$0xff]
        %v908 = vld [vmem:[#allocation8 + $0x108] sm:$0xff]
        %v909 = vld [vmem:[#allocation8 + $0x110] sm:$0xff]
        %v910 = vld [vmem:[#allocation8 + $0x118] sm:$0xff]
        %v911 = vld [vmem:[#allocation8 + $0x120] sm:$0xff]
        %v912 = vld [vmem:[#allocation8 + $0x128] sm:$0xff]
        %v913 = vld [vmem:[#allocation8 + $0x130] sm:$0xff]
        %v914 = vld [vmem:[#allocation8 + $0x138] sm:$0xff]
        %v915 = vld [vmem:[#allocation8 + $0x140] sm:$0xff]
        %v916 = vld [vmem:[#allocation8 + $0x148] sm:$0xff]
        %v917 = vld [vmem:[#allocation8 + $0x150] sm:$0xff]
        %v918 = vld [vmem:[#allocation8 + $0x158] sm:$0xff]
        %v919 = vld [vmem:[#allocation8 + $0x160] sm:$0xff]
        %v920 = vld [vmem:[#allocation8 + $0x168] sm:$0xff]
        %v921 = vld [vmem:[#allocation8 + $0x170] sm:$0xff]
        %v922 = vld [vmem:[#allocation8 + $0x178] sm:$0xff]
        %v923 = vld [vmem:[#allocation8 + $0x180] sm:$0xff]
        %v924 = vld [vmem:[#allocation8 + $0x188] sm:$0xff]
        %v925 = vld [vmem:[#allocation8 + $0x190] sm:$0xff]
        %v926 = vld [vmem:[#allocation8 + $0x198] sm:$0xff]
        %v927 = vld [vmem:[#allocation8 + $0x1a0] sm:$0xff]
        %v928 = vld [vmem:[#allocation8 + $0x1a8] sm:$0xff]
        %v929 = vld [vmem:[#allocation8 + $0x1b0] sm:$0xff]
        %v930 = vld [vmem:[#allocation8 + $0x1b8] sm:$0xff]
        %v931 = vld [vmem:[#allocation8 + $0x1c0] sm:$0xff]
        %v932 = vld [vmem:[#allocation8 + $0x1c8] sm:$0xff]
        %v933 = vld [vmem:[#allocation8 + $0x1d0] sm:$0xff]
        %v934 = vld [vmem:[#allocation8 + $0x1d8] sm:$0xff]
        %v935 = vld [vmem:[#allocation8 + $0x1e0] sm:$0xff]
        %v936 = vld [vmem:[#allocation8 + $0x1e8] sm:$0xff]
        %v937 = vld [vmem:[#allocation8 + $0x1f0] sm:$0xff]
        %v938 = vld [vmem:[#allocation8 + $0x1f8] sm:$0xff]
        %v939 = vld [vmem:[#allocation8 + $0x200] sm:$0xff]
        %v940 = vld [vmem:[#allocation8 + $0x208] sm:$0xff]
        %v941 = vld [vmem:[#allocation8 + $0x210] sm:$0xff]
        %v942 = vld [vmem:[#allocation8 + $0x218] sm:$0xff]
        %v943 = vld [vmem:[#allocation8 + $0x220] sm:$0xff]
        %v944 = vld [vmem:[#allocation8 + $0x228] sm:$0xff]
        %v945 = vld [vmem:[#allocation8 + $0x230] sm:$0xff]
        %v946 = vld [vmem:[#allocation8 + $0x238] sm:$0xff]
        %v947 = vld [vmem:[#allocation8 + $0x240] sm:$0xff]
        %v948 = vld [vmem:[#allocation8 + $0x248] sm:$0xff]
        %v949 = vld [vmem:[#allocation8 + $0x250] sm:$0xff]
        %v950 = vld [vmem:[#allocation8 + $0x258] sm:$0xff]
        %v951 = vld [vmem:[#allocation8 + $0x260] sm:$0xff]
        %v952 = vld [vmem:[#allocation8 + $0x268] sm:$0xff]
        %v953 = vld [vmem:[#allocation8 + $0x270] sm:$0xff]
        %v954 = vld [vmem:[#allocation8 + $0x278] sm:$0xff]
        %v955 = vld [vmem:[#allocation8 + $0x280] sm:$0xff]
        %v956 = vld [vmem:[#allocation8 + $0x288] sm:$0xff]
        %v957 = vld [vmem:[#allocation8 + $0x290] sm:$0xff]
        %v958 = vld [vmem:[#allocation8 + $0x298] sm:$0xff]
        %v959 = vld [vmem:[#allocation8 + $0x2a0] sm:$0xff]
        %v960 = vld [vmem:[#allocation8 + $0x2a8] sm:$0xff]
        %v961 = vld [vmem:[#allocation8 + $0x2b0] sm:$0xff]
        %v962 = vld [vmem:[#allocation8 + $0x2b8] sm:$0xff]
        %v963 = vld [vmem:[#allocation8 + $0x2c0] sm:$0xff]
        %v964 = vld [vmem:[#allocation8 + $0x2c8] sm:$0xff]
        %v965 = vld [vmem:[#allocation8 + $0x2d0] sm:$0xff]
        %v966 = vld [vmem:[#allocation8 + $0x2d8] sm:$0xff]
        %v967 = vld [vmem:[#allocation8 + $0x2e0] sm:$0xff]
        %v968 = vld [vmem:[#allocation8 + $0x2e8] sm:$0xff]
        %v969 = vld [vmem:[#allocation8 + $0x2f0] sm:$0xff]
        %v970 = vld [vmem:[#allocation8 + $0x2f8] sm:$0xff]
        %v971 = vld [vmem:[#allocation8 + $0x300] sm:$0xff]
        %v972 = vld [vmem:[#allocation8 + $0x308] sm:$0xff]
        %v973 = vld [vmem:[#allocation8 + $0x310] sm:$0xff]
        %v974 = vld [vmem:[#allocation8 + $0x318] sm:$0xff]
        %v975 = vld [vmem:[#allocation8 + $0x320] sm:$0xff]
        %v976 = vld [vmem:[#allocation8 + $0x328] sm:$0xff]
        %v977 = vld [vmem:[#allocation8 + $0x330] sm:$0xff]
        %v978 = vld [vmem:[#allocation8 + $0x338] sm:$0xff]
        %v979 = vld [vmem:[#allocation8 + $0x340] sm:$0xff]
        %v980 = vld [vmem:[#allocation8 + $0x348] sm:$0xff]
        %v981 = vld [vmem:[#allocation8 + $0x350] sm:$0xff]
        %v982 = vld [vmem:[#allocation8 + $0x358] sm:$0xff]
        %v983 = vld [vmem:[#allocation8 + $0x360] sm:$0xff]
        %v984 = vld [vmem:[#allocation8 + $0x368] sm:$0xff]
        %v985 = vld [vmem:[#allocation8 + $0x370] sm:$0xff]
        %v986 = vld [vmem:[#allocation8 + $0x378] sm:$0xff]
        %v987 = vld [vmem:[#allocation8 + $0x380] sm:$0xff]
        %v988 = vld [vmem:[#allocation8 + $0x388] sm:$0xff]
        %v989 = vld [vmem:[#allocation8 + $0x390] sm:$0xff]
        %v990 = vld [vmem:[#allocation8 + $0x398] sm:$0xff]
        %v991 = vld [vmem:[#allocation8 + $0x3a0] sm:$0xff]
        %v992 = vld [vmem:[#allocation8 + $0x3a8] sm:$0xff]
        %v993 = vld [vmem:[#allocation8 + $0x3b0] sm:$0xff]
        %v994 = vld [vmem:[#allocation8 + $0x3b8] sm:$0xff]
        %v995 = vld [vmem:[#allocation8 + $0x3c0] sm:$0xff]
        %v996 = vld [vmem:[#allocation8 + $0x3c8] sm:$0xff]
        %v997 = vld [vmem:[#allocation8 + $0x3d0] sm:$0xff]
        %v998 = vld [vmem:[#allocation8 + $0x3d8] sm:$0xff]
        %v999 = vld [vmem:[#allocation8 + $0x3e0] sm:$0xff]
        %v1000 = vld [vmem:[#allocation8 + $0x3e8] sm:$0xff]
        %v1001 = vld [vmem:[#allocation8 + $0x3f0] sm:$0xff]
        %v1002 = vld [vmem:[#allocation8 + $0x3f8] sm:$0xff]
        %v1003 = vld [vmem:[#allocation8 + $0x400] sm:$0xff]
        %v1004 = vld [vmem:[#allocation8 + $0x408] sm:$0xff]
        %v1005 = vld [vmem:[#allocation8 + $0x410] sm:$0xff]
        %v1006 = vld [vmem:[#allocation8 + $0x418] sm:$0xff]
        %v1007 = vld [vmem:[#allocation8 + $0x420] sm:$0xff]
        %v1008 = vld [vmem:[#allocation8 + $0x428] sm:$0xff]
        %v1009 = vld [vmem:[#allocation8 + $0x430] sm:$0xff]
        %v1010 = vld [vmem:[#allocation8 + $0x438] sm:$0xff]
        %v1011 = vld [vmem:[#allocation8 + $0x440] sm:$0xff]
        %v1012 = vld [vmem:[#allocation8 + $0x448] sm:$0xff]
        %v1013 = vld [vmem:[#allocation8 + $0x450] sm:$0xff]
        %v1014 = vld [vmem:[#allocation8 + $0x458] sm:$0xff]
        %v1015 = vld [vmem:[#allocation8 + $0x460] sm:$0xff]
        %v1016 = vld [vmem:[#allocation8 + $0x468] sm:$0xff]
        %v1017 = vld [vmem:[#allocation8 + $0x470] sm:$0xff]
        %v1018 = vld [vmem:[#allocation8 + $0x478] sm:$0xff]
        %v1019 = vld [vmem:[#allocation8 + $0x480] sm:$0xff]
        %v1020 = vld [vmem:[#allocation8 + $0x488] sm:$0xff]
        %v1021 = vld [vmem:[#allocation8 + $0x490] sm:$0xff]
        %v1022 = vld [vmem:[#allocation8 + $0x498] sm:$0xff]
        %v1023 = vld [vmem:[#allocation8 + $0x4a0] sm:$0xff]
        %v1024 = vld [vmem:[#allocation8 + $0x4a8] sm:$0xff]
        %v1025 = vld [vmem:[#allocation8 + $0x4b0] sm:$0xff]
        %v1026 = vld [vmem:[#allocation8 + $0x4b8] sm:$0xff]
        %v1027 = vld [vmem:[#allocation8 + $0x4c0] sm:$0xff]
        %v1028 = vld [vmem:[#allocation8 + $0x4c8] sm:$0xff]
        %v1029 = vld [vmem:[#allocation8 + $0x4d0] sm:$0xff]
        %v1030 = vld [vmem:[#allocation8 + $0x4d8] sm:$0xff]
        %v1031 = vld [vmem:[#allocation8 + $0x4e0] sm:$0xff]
        %v1032 = vld [vmem:[#allocation8 + $0x4e8] sm:$0xff]
        %v1033 = vld [vmem:[#allocation8 + $0x4f0] sm:$0xff]
        %v1034 = vld [vmem:[#allocation8 + $0x4f8] sm:$0xff]
        %v1035 = vld [vmem:[#allocation8 + $0x500] sm:$0xff]
        %v1036 = vld [vmem:[#allocation8 + $0x508] sm:$0xff]
        %v1037 = vld [vmem:[#allocation8 + $0x510] sm:$0xff]
        %v1038 = vld [vmem:[#allocation8 + $0x518] sm:$0xff]
        %v1039 = vld [vmem:[#allocation8 + $0x520] sm:$0xff]
        %v1040 = vld [vmem:[#allocation8 + $0x528] sm:$0xff]
        %v1041 = vld [vmem:[#allocation8 + $0x530] sm:$0xff]
        %v1042 = vld [vmem:[#allocation8 + $0x538] sm:$0xff]
        %v1043 = vld [vmem:[#allocation8 + $0x540] sm:$0xff]
        %v1044 = vld [vmem:[#allocation8 + $0x548] sm:$0xff]
        %v1045 = vld [vmem:[#allocation8 + $0x550] sm:$0xff]
        %v1046 = vld [vmem:[#allocation8 + $0x558] sm:$0xff]
        %v1047 = vld [vmem:[#allocation8 + $0x560] sm:$0xff]
        %v1048 = vld [vmem:[#allocation8 + $0x568] sm:$0xff]
        %v1049 = vld [vmem:[#allocation8 + $0x570] sm:$0xff]
        %v1050 = vld [vmem:[#allocation8 + $0x578] sm:$0xff]
        %v1051 = vld [vmem:[#allocation8 + $0x580] sm:$0xff]
        %v1052 = vld [vmem:[#allocation8 + $0x588] sm:$0xff]
        %v1053 = vld [vmem:[#allocation8 + $0x590] sm:$0xff]
        %v1054 = vld [vmem:[#allocation8 + $0x598] sm:$0xff]
        %v1055 = vld [vmem:[#allocation8 + $0x5a0] sm:$0xff]
        %v1056 = vld [vmem:[#allocation8 + $0x5a8] sm:$0xff]
        %v1057 = vld [vmem:[#allocation8 + $0x5b0] sm:$0xff]
        %v1058 = vld [vmem:[#allocation8 + $0x5b8] sm:$0xff]
        %v1059 = vld [vmem:[#allocation8 + $0x5c0] sm:$0xff]
        %v1060 = vld [vmem:[#allocation8 + $0x5c8] sm:$0xff]
        %v1061 = vld [vmem:[#allocation8 + $0x5d0] sm:$0xff]
        %v1062 = vld [vmem:[#allocation8 + $0x5d8] sm:$0xff]
        %v1063 = vld [vmem:[#allocation8 + $0x5e0] sm:$0xff]
        %v1064 = vld [vmem:[#allocation8 + $0x5e8] sm:$0xff]
        %v1065 = vld [vmem:[#allocation8 + $0x5f0] sm:$0xff]
        %v1066 = vld [vmem:[#allocation8 + $0x5f8] sm:$0xff]
        %v1067 = vld [vmem:[#allocation8 + $0x600] sm:$0xff]
        %v1068 = vld [vmem:[#allocation8 + $0x608] sm:$0xff]
        %v1069 = vld [vmem:[#allocation8 + $0x610] sm:$0xff]
        %v1070 = vld [vmem:[#allocation8 + $0x618] sm:$0xff]
        %v1071 = vld [vmem:[#allocation8 + $0x620] sm:$0xff]
        %v1072 = vld [vmem:[#allocation8 + $0x628] sm:$0xff]
        %v1073 = vld [vmem:[#allocation8 + $0x630] sm:$0xff]
        %v1074 = vld [vmem:[#allocation8 + $0x638] sm:$0xff]
        %v1075 = vld [vmem:[#allocation8 + $0x640] sm:$0xff]
        %v1076 = vld [vmem:[#allocation8 + $0x648] sm:$0xff]
        %v1077 = vld [vmem:[#allocation8 + $0x650] sm:$0xff]
        %v1078 = vld [vmem:[#allocation8 + $0x658] sm:$0xff]
        %v1079 = vld [vmem:[#allocation8 + $0x660] sm:$0xff]
        %v1080 = vld [vmem:[#allocation8 + $0x668] sm:$0xff]
        %v1081 = vld [vmem:[#allocation8 + $0x670] sm:$0xff]
        %v1082 = vld [vmem:[#allocation8 + $0x678] sm:$0xff]
        %v1083 = vld [vmem:[#allocation8 + $0x680] sm:$0xff]
        %v1084 = vld [vmem:[#allocation8 + $0x688] sm:$0xff]
        %v1085 = vld [vmem:[#allocation8 + $0x690] sm:$0xff]
        %v1086 = vld [vmem:[#allocation8 + $0x698] sm:$0xff]
        %v1087 = vld [vmem:[#allocation8 + $0x6a0] sm:$0xff]
        %v1088 = vld [vmem:[#allocation8 + $0x6a8] sm:$0xff]
        %v1089 = vld [vmem:[#allocation8 + $0x6b0] sm:$0xff]
        %v1090 = vld [vmem:[#allocation8 + $0x6b8] sm:$0xff]
        %v1091 = vld [vmem:[#allocation8 + $0x6c0] sm:$0xff]
        %v1092 = vld [vmem:[#allocation8 + $0x6c8] sm:$0xff]
        %v1093 = vld [vmem:[#allocation8 + $0x6d0] sm:$0xff]
        %v1094 = vld [vmem:[#allocation8 + $0x6d8] sm:$0xff]
        %v1095 = vld [vmem:[#allocation8 + $0x6e0] sm:$0xff]
        %v1096 = vld [vmem:[#allocation8 + $0x6e8] sm:$0xff]
        %v1097 = vld [vmem:[#allocation8 + $0x6f0] sm:$0xff]
        %v1098 = vld [vmem:[#allocation8 + $0x6f8] sm:$0xff]
        %v1099 = vld [vmem:[#allocation8 + $0x700] sm:$0xff]
        %v1100 = vld [vmem:[#allocation8 + $0x708] sm:$0xff]
        %v1101 = vld [vmem:[#allocation8 + $0x710] sm:$0xff]
        %v1102 = vld [vmem:[#allocation8 + $0x718] sm:$0xff]
        %v1103 = vld [vmem:[#allocation8 + $0x720] sm:$0xff]
        %v1104 = vld [vmem:[#allocation8 + $0x728] sm:$0xff]
        %v1105 = vld [vmem:[#allocation8 + $0x730] sm:$0xff]
        %v1106 = vld [vmem:[#allocation8 + $0x738] sm:$0xff]
        %v1107 = vld [vmem:[#allocation8 + $0x740] sm:$0xff]
        %v1108 = vld [vmem:[#allocation8 + $0x748] sm:$0xff]
        %v1109 = vld [vmem:[#allocation8 + $0x750] sm:$0xff]
        %v1110 = vld [vmem:[#allocation8 + $0x758] sm:$0xff]
        %v1111 = vld [vmem:[#allocation8 + $0x760] sm:$0xff]
        %v1112 = vld [vmem:[#allocation8 + $0x768] sm:$0xff]
        %v1113 = vld [vmem:[#allocation8 + $0x770] sm:$0xff]
        %v1114 = vld [vmem:[#allocation8 + $0x778] sm:$0xff]
        %v1115 = vld [vmem:[#allocation8 + $0x780] sm:$0xff]
        %v1116 = vld [vmem:[#allocation8 + $0x788] sm:$0xff]
        %v1117 = vld [vmem:[#allocation8 + $0x790] sm:$0xff]
        %v1118 = vld [vmem:[#allocation8 + $0x798] sm:$0xff]
        %v1119 = vld [vmem:[#allocation8 + $0x7a0] sm:$0xff]
        %v1120 = vld [vmem:[#allocation8 + $0x7a8] sm:$0xff]
        %v1121 = vld [vmem:[#allocation8 + $0x7b0] sm:$0xff]
        %v1122 = vld [vmem:[#allocation8 + $0x7b8] sm:$0xff]
        %v1123 = vld [vmem:[#allocation8 + $0x7c0] sm:$0xff]
        %v1124 = vld [vmem:[#allocation8 + $0x7c8] sm:$0xff]
        %v1125 = vld [vmem:[#allocation8 + $0x7d0] sm:$0xff]
        %v1126 = vld [vmem:[#allocation8 + $0x7d8] sm:$0xff]
        %v1127 = vld [vmem:[#allocation8 + $0x7e0] sm:$0xff]
        %v1128 = vld [vmem:[#allocation8 + $0x7e8] sm:$0xff]
        %v1129 = vld [vmem:[#allocation8 + $0x7f0] sm:$0xff]
        %v1130 = vld [vmem:[#allocation8 + $0x7f8] sm:$0xff]
        %v1131 = vld [vmem:[#allocation8 + $0x800] sm:$0xff]
        %v1132 = vld [vmem:[#allocation8 + $0x808] sm:$0xff]
        %v1133 = vld [vmem:[#allocation8 + $0x810] sm:$0xff]
        %v1134 = vld [vmem:[#allocation8 + $0x818] sm:$0xff]
        %v1135 = vld [vmem:[#allocation8 + $0x820] sm:$0xff]
        %v1136 = vld [vmem:[#allocation8 + $0x828] sm:$0xff]
        %v1137 = vld [vmem:[#allocation8 + $0x830] sm:$0xff]
        %v1138 = vld [vmem:[#allocation8 + $0x838] sm:$0xff]
        %v1139 = vld [vmem:[#allocation8 + $0x840] sm:$0xff]
        %v1140 = vld [vmem:[#allocation8 + $0x848] sm:$0xff]
        %v1141 = vld [vmem:[#allocation8 + $0x850] sm:$0xff]
        %v1142 = vld [vmem:[#allocation8 + $0x858] sm:$0xff]
        %v1143 = vld [vmem:[#allocation8 + $0x860] sm:$0xff]
        %v1144 = vld [vmem:[#allocation8 + $0x868] sm:$0xff]
        %v1145 = vld [vmem:[#allocation8 + $0x870] sm:$0xff]
        %v1146 = vld [vmem:[#allocation8 + $0x878] sm:$0xff]
        %v1147 = vld [vmem:[#allocation8 + $0x880] sm:$0xff]
        %v1148 = vld [vmem:[#allocation8 + $0x888] sm:$0xff]
        %v1149 = vld [vmem:[#allocation8 + $0x890] sm:$0xff]
        %v1150 = vld [vmem:[#allocation8 + $0x898] sm:$0xff]
        %v1151 = vld [vmem:[#allocation8 + $0x8a0] sm:$0xff]
        %v1152 = vld [vmem:[#allocation8 + $0x8a8] sm:$0xff]
        %v1153 = vld [vmem:[#allocation8 + $0x8b0] sm:$0xff]
        %v1154 = vld [vmem:[#allocation8 + $0x8b8] sm:$0xff]
        %v1155 = vld [vmem:[#allocation8 + $0x8c0] sm:$0xff]
        %v1156 = vld [vmem:[#allocation8 + $0x8c8] sm:$0xff]
        %v1157 = vld [vmem:[#allocation8 + $0x8d0] sm:$0xff]
        %v1158 = vld [vmem:[#allocation8 + $0x8d8] sm:$0xff]
        %v1159 = vld [vmem:[#allocation8 + $0x8e0] sm:$0xff]
        %v1160 = vld [vmem:[#allocation8 + $0x8e8] sm:$0xff]
        %v1161 = vld [vmem:[#allocation8 + $0x8f0] sm:$0xff]
        %v1162 = vld [vmem:[#allocation8 + $0x8f8] sm:$0xff]
        %v1163 = vld [vmem:[#allocation10] sm:$0x3f]
        %v1165 = vlaneseq
        %v1166 = vshrl.u32 %v1165, 7
        %v1167 = vsub.s32 0, %v1166
        %v1168 = vrot.slane %v1163, %v1167
        %v1169 = vlaneseq
        %v1170 = vshrl.u32 %v1169, 7
        %v1171 = vsub.s32 1, %v1170
        %v1172 = vrot.slane %v1163, %v1171
        %v1173 = vlaneseq
        %v1174 = vshrl.u32 %v1173, 7
        %v1175 = vsub.s32 2, %v1174
        %v1176 = vrot.slane %v1163, %v1175
        %v1177 = vlaneseq
        %v1178 = vshrl.u32 %v1177, 7
        %v1179 = vsub.s32 3, %v1178
        %v1180 = vrot.slane %v1163, %v1179
        %v1181 = vlaneseq
        %v1182 = vshrl.u32 %v1181, 7
        %v1183 = vsub.s32 4, %v1182
        %v1184 = vrot.slane %v1163, %v1183
        %v1185 = vlaneseq
        %v1186 = vshrl.u32 %v1185, 7
        %v1187 = vsub.s32 5, %v1186
        %v1188 = vrot.slane %v1163, %v1187
        %v1483 = vunpack.c.l.b16 %v875
        %v1484 = vunpack.c.h.b16 %v875
        %v1485 = vunpack.c.l.b16 %v876
        %v1486 = vunpack.c.h.b16 %v876
        %v1487 = vunpack.c.l.b16 %v877
        %v1488 = vunpack.c.h.b16 %v877
        %v1489 = vunpack.c.l.b16 %v878
        %v1490 = vunpack.c.h.b16 %v878
        %v1491 = vunpack.c.l.b16 %v879
        %v1492 = vunpack.c.h.b16 %v879
        %v1493 = vunpack.c.l.b16 %v880
        %v1494 = vunpack.c.h.b16 %v880
        %v1495 = vunpack.c.l.b16 %v881
        %v1496 = vunpack.c.h.b16 %v881
        %v1497 = vunpack.c.l.b16 %v882
        %v1498 = vunpack.c.h.b16 %v882
        %v1499 = vunpack.c.l.b16 %v883
        %v1500 = vunpack.c.h.b16 %v883
        %v1501 = vunpack.c.l.b16 %v884
        %v1502 = vunpack.c.h.b16 %v884
        %v1503 = vunpack.c.l.b16 %v885
        %v1504 = vunpack.c.h.b16 %v885
        %v1505 = vunpack.c.l.b16 %v886
        %v1506 = vunpack.c.h.b16 %v886
        %v1507 = vunpack.c.l.b16 %v887
        %v1508 = vunpack.c.h.b16 %v887
        %v1509 = vunpack.c.l.b16 %v888
        %v1510 = vunpack.c.h.b16 %v888
        %v1511 = vunpack.c.l.b16 %v889
        %v1512 = vunpack.c.h.b16 %v889
        %v1513 = vunpack.c.l.b16 %v890
        %v1514 = vunpack.c.h.b16 %v890
        %v1515 = vunpack.c.l.b16 %v891
        %v1516 = vunpack.c.h.b16 %v891
        %v1517 = vunpack.c.l.b16 %v892
        %v1518 = vunpack.c.h.b16 %v892
        %v1519 = vunpack.c.l.b16 %v893
        %v1520 = vunpack.c.h.b16 %v893
        %v1521 = vunpack.c.l.b16 %v894
        %v1522 = vunpack.c.h.b16 %v894
        %v1523 = vunpack.c.l.b16 %v895
        %v1524 = vunpack.c.h.b16 %v895
        %v1525 = vunpack.c.l.b16 %v896
        %v1526 = vunpack.c.h.b16 %v896
        %v1527 = vunpack.c.l.b16 %v897
        %v1528 = vunpack.c.h.b16 %v897
        %v1529 = vunpack.c.l.b16 %v898
        %v1530 = vunpack.c.h.b16 %v898
        %v1531 = vunpack.c.l.b16 %v899
        %v1532 = vunpack.c.h.b16 %v899
        %v1533 = vunpack.c.l.b16 %v900
        %v1534 = vunpack.c.h.b16 %v900
        %v1535 = vunpack.c.l.b16 %v901
        %v1536 = vunpack.c.h.b16 %v901
        %v1537 = vunpack.c.l.b16 %v902
        %v1538 = vunpack.c.h.b16 %v902
        %v1539 = vunpack.c.l.b16 %v903
        %v1540 = vunpack.c.h.b16 %v903
        %v1541 = vunpack.c.l.b16 %v904
        %v1542 = vunpack.c.h.b16 %v904
        %v1543 = vunpack.c.l.b16 %v905
        %v1544 = vunpack.c.h.b16 %v905
        %v1545 = vunpack.c.l.b16 %v906
        %v1546 = vunpack.c.h.b16 %v906
        %v1547 = vunpack.c.l.b16 %v907
        %v1548 = vunpack.c.h.b16 %v907
        %v1549 = vunpack.c.l.b16 %v908
        %v1550 = vunpack.c.h.b16 %v908
        %v1551 = vunpack.c.l.b16 %v909
        %v1552 = vunpack.c.h.b16 %v909
        %v1553 = vunpack.c.l.b16 %v910
        %v1554 = vunpack.c.h.b16 %v910
        %v1555 = vunpack.c.l.b16 %v911
        %v1556 = vunpack.c.h.b16 %v911
        %v1557 = vunpack.c.l.b16 %v912
        %v1558 = vunpack.c.h.b16 %v912
        %v1559 = vunpack.c.l.b16 %v913
        %v1560 = vunpack.c.h.b16 %v913
        %v1561 = vunpack.c.l.b16 %v914
        %v1562 = vunpack.c.h.b16 %v914
        %v1563 = vunpack.c.l.b16 %v915
        %v1564 = vunpack.c.h.b16 %v915
        %v1565 = vunpack.c.l.b16 %v916
        %v1566 = vunpack.c.h.b16 %v916
        %v1567 = vunpack.c.l.b16 %v917
        %v1568 = vunpack.c.h.b16 %v917
        %v1569 = vunpack.c.l.b16 %v918
        %v1570 = vunpack.c.h.b16 %v918
        %v1571 = vunpack.c.l.b16 %v919
        %v1572 = vunpack.c.h.b16 %v919
        %v1573 = vunpack.c.l.b16 %v920
        %v1574 = vunpack.c.h.b16 %v920
        %v1575 = vunpack.c.l.b16 %v921
        %v1576 = vunpack.c.h.b16 %v921
        %v1577 = vunpack.c.l.b16 %v922
        %v1578 = vunpack.c.h.b16 %v922
        %v1579 = vunpack.c.l.b16 %v923
        %v1580 = vunpack.c.h.b16 %v923
        %v1581 = vunpack.c.l.b16 %v924
        %v1582 = vunpack.c.h.b16 %v924
        %v1583 = vunpack.c.l.b16 %v925
        %v1584 = vunpack.c.h.b16 %v925
        %v1585 = vunpack.c.l.b16 %v926
        %v1586 = vunpack.c.h.b16 %v926
        %v1587 = vunpack.c.l.b16 %v927
        %v1588 = vunpack.c.h.b16 %v927
        %v1589 = vunpack.c.l.b16 %v928
        %v1590 = vunpack.c.h.b16 %v928
        %v1591 = vunpack.c.l.b16 %v929
        %v1592 = vunpack.c.h.b16 %v929
        %v1593 = vunpack.c.l.b16 %v930
        %v1594 = vunpack.c.h.b16 %v930
        %v1595 = vunpack.c.l.b16 %v931
        %v1596 = vunpack.c.h.b16 %v931
        %v1597 = vunpack.c.l.b16 %v932
        %v1598 = vunpack.c.h.b16 %v932
        %v1599 = vunpack.c.l.b16 %v933
        %v1600 = vunpack.c.h.b16 %v933
        %v1601 = vunpack.c.l.b16 %v934
        %v1602 = vunpack.c.h.b16 %v934
        %v1603 = vunpack.c.l.b16 %v935
        %v1604 = vunpack.c.h.b16 %v935
        %v1605 = vunpack.c.l.b16 %v936
        %v1606 = vunpack.c.h.b16 %v936
        %v1607 = vunpack.c.l.b16 %v937
        %v1608 = vunpack.c.h.b16 %v937
        %v1609 = vunpack.c.l.b16 %v938
        %v1610 = vunpack.c.h.b16 %v938
        %v1611 = vunpack.c.l.b16 %v939
        %v1612 = vunpack.c.h.b16 %v939
        %v1613 = vunpack.c.l.b16 %v940
        %v1614 = vunpack.c.h.b16 %v940
        %v1615 = vunpack.c.l.b16 %v941
        %v1616 = vunpack.c.h.b16 %v941
        %v1617 = vunpack.c.l.b16 %v942
        %v1618 = vunpack.c.h.b16 %v942
        %v1619 = vunpack.c.l.b16 %v943
        %v1620 = vunpack.c.h.b16 %v943
        %v1621 = vunpack.c.l.b16 %v944
        %v1622 = vunpack.c.h.b16 %v944
        %v1623 = vunpack.c.l.b16 %v945
        %v1624 = vunpack.c.h.b16 %v945
        %v1625 = vunpack.c.l.b16 %v946
        %v1626 = vunpack.c.h.b16 %v946
        %v1627 = vunpack.c.l.b16 %v947
        %v1628 = vunpack.c.h.b16 %v947
        %v1629 = vunpack.c.l.b16 %v948
        %v1630 = vunpack.c.h.b16 %v948
        %v1631 = vunpack.c.l.b16 %v949
        %v1632 = vunpack.c.h.b16 %v949
        %v1633 = vunpack.c.l.b16 %v950
        %v1634 = vunpack.c.h.b16 %v950
        %v1635 = vunpack.c.l.b16 %v951
        %v1636 = vunpack.c.h.b16 %v951
        %v1637 = vunpack.c.l.b16 %v952
        %v1638 = vunpack.c.h.b16 %v952
        %v1639 = vunpack.c.l.b16 %v953
        %v1640 = vunpack.c.h.b16 %v953
        %v1641 = vunpack.c.l.b16 %v954
        %v1642 = vunpack.c.h.b16 %v954
        %v1643 = vunpack.c.l.b16 %v955
        %v1644 = vunpack.c.h.b16 %v955
        %v1645 = vunpack.c.l.b16 %v956
        %v1646 = vunpack.c.h.b16 %v956
        %v1647 = vunpack.c.l.b16 %v957
        %v1648 = vunpack.c.h.b16 %v957
        %v1649 = vunpack.c.l.b16 %v958
        %v1650 = vunpack.c.h.b16 %v958
        %v1651 = vunpack.c.l.b16 %v959
        %v1652 = vunpack.c.h.b16 %v959
        %v1653 = vunpack.c.l.b16 %v960
        %v1654 = vunpack.c.h.b16 %v960
        %v1655 = vunpack.c.l.b16 %v961
        %v1656 = vunpack.c.h.b16 %v961
        %v1657 = vunpack.c.l.b16 %v962
        %v1658 = vunpack.c.h.b16 %v962
        %v1659 = vunpack.c.l.b16 %v963
        %v1660 = vunpack.c.h.b16 %v963
        %v1661 = vunpack.c.l.b16 %v964
        %v1662 = vunpack.c.h.b16 %v964
        %v1663 = vunpack.c.l.b16 %v965
        %v1664 = vunpack.c.h.b16 %v965
        %v1665 = vunpack.c.l.b16 %v966
        %v1666 = vunpack.c.h.b16 %v966
        %v1667 = vunpack.c.l.b16 %v967
        %v1668 = vunpack.c.h.b16 %v967
        %v1669 = vunpack.c.l.b16 %v968
        %v1670 = vunpack.c.h.b16 %v968
        %v1671 = vunpack.c.l.b16 %v969
        %v1672 = vunpack.c.h.b16 %v969
        %v1673 = vunpack.c.l.b16 %v970
        %v1674 = vunpack.c.h.b16 %v970
        %v1675 = vunpack.c.l.b16 %v971
        %v1676 = vunpack.c.h.b16 %v971
        %v1677 = vunpack.c.l.b16 %v972
        %v1678 = vunpack.c.h.b16 %v972
        %v1679 = vunpack.c.l.b16 %v973
        %v1680 = vunpack.c.h.b16 %v973
        %v1681 = vunpack.c.l.b16 %v974
        %v1682 = vunpack.c.h.b16 %v974
        %v1683 = vunpack.c.l.b16 %v975
        %v1684 = vunpack.c.h.b16 %v975
        %v1685 = vunpack.c.l.b16 %v976
        %v1686 = vunpack.c.h.b16 %v976
        %v1687 = vunpack.c.l.b16 %v977
        %v1688 = vunpack.c.h.b16 %v977
        %v1689 = vunpack.c.l.b16 %v978
        %v1690 = vunpack.c.h.b16 %v978
        %v1691 = vunpack.c.l.b16 %v979
        %v1692 = vunpack.c.h.b16 %v979
        %v1693 = vunpack.c.l.b16 %v980
        %v1694 = vunpack.c.h.b16 %v980
        %v1695 = vunpack.c.l.b16 %v981
        %v1696 = vunpack.c.h.b16 %v981
        %v1697 = vunpack.c.l.b16 %v982
        %v1698 = vunpack.c.h.b16 %v982
        %v1699 = vunpack.c.l.b16 %v983
        %v1700 = vunpack.c.h.b16 %v983
        %v1701 = vunpack.c.l.b16 %v984
        %v1702 = vunpack.c.h.b16 %v984
        %v1703 = vunpack.c.l.b16 %v985
        %v1704 = vunpack.c.h.b16 %v985
        %v1705 = vunpack.c.l.b16 %v986
        %v1706 = vunpack.c.h.b16 %v986
        %v1707 = vunpack.c.l.b16 %v987
        %v1708 = vunpack.c.h.b16 %v987
        %v1709 = vunpack.c.l.b16 %v988
        %v1710 = vunpack.c.h.b16 %v988
        %v1711 = vunpack.c.l.b16 %v989
        %v1712 = vunpack.c.h.b16 %v989
        %v1713 = vunpack.c.l.b16 %v990
        %v1714 = vunpack.c.h.b16 %v990
        %v1715 = vunpack.c.l.b16 %v991
        %v1716 = vunpack.c.h.b16 %v991
        %v1717 = vunpack.c.l.b16 %v992
        %v1718 = vunpack.c.h.b16 %v992
        %v1719 = vunpack.c.l.b16 %v993
        %v1720 = vunpack.c.h.b16 %v993
        %v1721 = vunpack.c.l.b16 %v994
        %v1722 = vunpack.c.h.b16 %v994
        %v1723 = vunpack.c.l.b16 %v995
        %v1724 = vunpack.c.h.b16 %v995
        %v1725 = vunpack.c.l.b16 %v996
        %v1726 = vunpack.c.h.b16 %v996
        %v1727 = vunpack.c.l.b16 %v997
        %v1728 = vunpack.c.h.b16 %v997
        %v1729 = vunpack.c.l.b16 %v998
        %v1730 = vunpack.c.h.b16 %v998
        %v1731 = vunpack.c.l.b16 %v999
        %v1732 = vunpack.c.h.b16 %v999
        %v1733 = vunpack.c.l.b16 %v1000
        %v1734 = vunpack.c.h.b16 %v1000
        %v1735 = vunpack.c.l.b16 %v1001
        %v1736 = vunpack.c.h.b16 %v1001
        %v1737 = vunpack.c.l.b16 %v1002
        %v1738 = vunpack.c.h.b16 %v1002
        %v1739 = vunpack.c.l.b16 %v1003
        %v1740 = vunpack.c.h.b16 %v1003
        %v1741 = vunpack.c.l.b16 %v1004
        %v1742 = vunpack.c.h.b16 %v1004
        %v1743 = vunpack.c.l.b16 %v1005
        %v1744 = vunpack.c.h.b16 %v1005
        %v1745 = vunpack.c.l.b16 %v1006
        %v1746 = vunpack.c.h.b16 %v1006
        %v1747 = vunpack.c.l.b16 %v1007
        %v1748 = vunpack.c.h.b16 %v1007
        %v1749 = vunpack.c.l.b16 %v1008
        %v1750 = vunpack.c.h.b16 %v1008
        %v1751 = vunpack.c.l.b16 %v1009
        %v1752 = vunpack.c.h.b16 %v1009
        %v1753 = vunpack.c.l.b16 %v1010
        %v1754 = vunpack.c.h.b16 %v1010
        %v1755 = vunpack.c.l.b16 %v1011
        %v1756 = vunpack.c.h.b16 %v1011
        %v1757 = vunpack.c.l.b16 %v1012
        %v1758 = vunpack.c.h.b16 %v1012
        %v1759 = vunpack.c.l.b16 %v1013
        %v1760 = vunpack.c.h.b16 %v1013
        %v1761 = vunpack.c.l.b16 %v1014
        %v1762 = vunpack.c.h.b16 %v1014
        %v1763 = vunpack.c.l.b16 %v1015
        %v1764 = vunpack.c.h.b16 %v1015
        %v1765 = vunpack.c.l.b16 %v1016
        %v1766 = vunpack.c.h.b16 %v1016
        %v1767 = vunpack.c.l.b16 %v1017
        %v1768 = vunpack.c.h.b16 %v1017
        %v1769 = vunpack.c.l.b16 %v1018
        %v1770 = vunpack.c.h.b16 %v1018
        %v1771 = vunpack.c.l.b16 %v1019
        %v1772 = vunpack.c.h.b16 %v1019
        %v1773 = vunpack.c.l.b16 %v1020
        %v1774 = vunpack.c.h.b16 %v1020
        %v1775 = vunpack.c.l.b16 %v1021
        %v1776 = vunpack.c.h.b16 %v1021
        %v1777 = vunpack.c.l.b16 %v1022
        %v1778 = vunpack.c.h.b16 %v1022
        %v1779 = vunpack.c.l.b16 %v1023
        %v1780 = vunpack.c.h.b16 %v1023
        %v1781 = vunpack.c.l.b16 %v1024
        %v1782 = vunpack.c.h.b16 %v1024
        %v1783 = vunpack.c.l.b16 %v1025
        %v1784 = vunpack.c.h.b16 %v1025
        %v1785 = vunpack.c.l.b16 %v1026
        %v1786 = vunpack.c.h.b16 %v1026
        %v1787 = vunpack.c.l.b16 %v1027
        %v1788 = vunpack.c.h.b16 %v1027
        %v1789 = vunpack.c.l.b16 %v1028
        %v1790 = vunpack.c.h.b16 %v1028
        %v1791 = vunpack.c.l.b16 %v1029
        %v1792 = vunpack.c.h.b16 %v1029
        %v1793 = vunpack.c.l.b16 %v1030
        %v1794 = vunpack.c.h.b16 %v1030
        %v1795 = vunpack.c.l.b16 %v1031
        %v1796 = vunpack.c.h.b16 %v1031
        %v1797 = vunpack.c.l.b16 %v1032
        %v1798 = vunpack.c.h.b16 %v1032
        %v1799 = vunpack.c.l.b16 %v1033
        %v1800 = vunpack.c.h.b16 %v1033
        %v1801 = vunpack.c.l.b16 %v1034
        %v1802 = vunpack.c.h.b16 %v1034
        %v1803 = vunpack.c.l.b16 %v1035
        %v1804 = vunpack.c.h.b16 %v1035
        %v1805 = vunpack.c.l.b16 %v1036
        %v1806 = vunpack.c.h.b16 %v1036
        %v1807 = vunpack.c.l.b16 %v1037
        %v1808 = vunpack.c.h.b16 %v1037
        %v1809 = vunpack.c.l.b16 %v1038
        %v1810 = vunpack.c.h.b16 %v1038
        %v1811 = vunpack.c.l.b16 %v1039
        %v1812 = vunpack.c.h.b16 %v1039
        %v1813 = vunpack.c.l.b16 %v1040
        %v1814 = vunpack.c.h.b16 %v1040
        %v1815 = vunpack.c.l.b16 %v1041
        %v1816 = vunpack.c.h.b16 %v1041
        %v1817 = vunpack.c.l.b16 %v1042
        %v1818 = vunpack.c.h.b16 %v1042
        %v1819 = vunpack.c.l.b16 %v1043
        %v1820 = vunpack.c.h.b16 %v1043
        %v1821 = vunpack.c.l.b16 %v1044
        %v1822 = vunpack.c.h.b16 %v1044
        %v1823 = vunpack.c.l.b16 %v1045
        %v1824 = vunpack.c.h.b16 %v1045
        %v1825 = vunpack.c.l.b16 %v1046
        %v1826 = vunpack.c.h.b16 %v1046
        %v1827 = vunpack.c.l.b16 %v1047
        %v1828 = vunpack.c.h.b16 %v1047
        %v1829 = vunpack.c.l.b16 %v1048
        %v1830 = vunpack.c.h.b16 %v1048
        %v1831 = vunpack.c.l.b16 %v1049
        %v1832 = vunpack.c.h.b16 %v1049
        %v1833 = vunpack.c.l.b16 %v1050
        %v1834 = vunpack.c.h.b16 %v1050
        %v1835 = vunpack.c.l.b16 %v1051
        %v1836 = vunpack.c.h.b16 %v1051
        %v1837 = vunpack.c.l.b16 %v1052
        %v1838 = vunpack.c.h.b16 %v1052
        %v1839 = vunpack.c.l.b16 %v1053
        %v1840 = vunpack.c.h.b16 %v1053
        %v1841 = vunpack.c.l.b16 %v1054
        %v1842 = vunpack.c.h.b16 %v1054
        %v1843 = vunpack.c.l.b16 %v1055
        %v1844 = vunpack.c.h.b16 %v1055
        %v1845 = vunpack.c.l.b16 %v1056
        %v1846 = vunpack.c.h.b16 %v1056
        %v1847 = vunpack.c.l.b16 %v1057
        %v1848 = vunpack.c.h.b16 %v1057
        %v1849 = vunpack.c.l.b16 %v1058
        %v1850 = vunpack.c.h.b16 %v1058
        %v1851 = vunpack.c.l.b16 %v1059
        %v1852 = vunpack.c.h.b16 %v1059
        %v1853 = vunpack.c.l.b16 %v1060
        %v1854 = vunpack.c.h.b16 %v1060
        %v1855 = vunpack.c.l.b16 %v1061
        %v1856 = vunpack.c.h.b16 %v1061
        %v1857 = vunpack.c.l.b16 %v1062
        %v1858 = vunpack.c.h.b16 %v1062
        %v1859 = vunpack.c.l.b16 %v1063
        %v1860 = vunpack.c.h.b16 %v1063
        %v1861 = vunpack.c.l.b16 %v1064
        %v1862 = vunpack.c.h.b16 %v1064
        %v1863 = vunpack.c.l.b16 %v1065
        %v1864 = vunpack.c.h.b16 %v1065
        %v1865 = vunpack.c.l.b16 %v1066
        %v1866 = vunpack.c.h.b16 %v1066
        %v1867 = vunpack.c.l.b16 %v1067
        %v1868 = vunpack.c.h.b16 %v1067
        %v1869 = vunpack.c.l.b16 %v1068
        %v1870 = vunpack.c.h.b16 %v1068
        %v1871 = vunpack.c.l.b16 %v1069
        %v1872 = vunpack.c.h.b16 %v1069
        %v1873 = vunpack.c.l.b16 %v1070
        %v1874 = vunpack.c.h.b16 %v1070
        %v1875 = vunpack.c.l.b16 %v1071
        %v1876 = vunpack.c.h.b16 %v1071
        %v1877 = vunpack.c.l.b16 %v1072
        %v1878 = vunpack.c.h.b16 %v1072
        %v1879 = vunpack.c.l.b16 %v1073
        %v1880 = vunpack.c.h.b16 %v1073
        %v1881 = vunpack.c.l.b16 %v1074
        %v1882 = vunpack.c.h.b16 %v1074
        %v1883 = vunpack.c.l.b16 %v1075
        %v1884 = vunpack.c.h.b16 %v1075
        %v1885 = vunpack.c.l.b16 %v1076
        %v1886 = vunpack.c.h.b16 %v1076
        %v1887 = vunpack.c.l.b16 %v1077
        %v1888 = vunpack.c.h.b16 %v1077
        %v1889 = vunpack.c.l.b16 %v1078
        %v1890 = vunpack.c.h.b16 %v1078
        %v1891 = vunpack.c.l.b16 %v1079
        %v1892 = vunpack.c.h.b16 %v1079
        %v1893 = vunpack.c.l.b16 %v1080
        %v1894 = vunpack.c.h.b16 %v1080
        %v1895 = vunpack.c.l.b16 %v1081
        %v1896 = vunpack.c.h.b16 %v1081
        %v1897 = vunpack.c.l.b16 %v1082
        %v1898 = vunpack.c.h.b16 %v1082
        %v1899 = vunpack.c.l.b16 %v1083
        %v1900 = vunpack.c.h.b16 %v1083
        %v1901 = vunpack.c.l.b16 %v1084
        %v1902 = vunpack.c.h.b16 %v1084
        %v1903 = vunpack.c.l.b16 %v1085
        %v1904 = vunpack.c.h.b16 %v1085
        %v1905 = vunpack.c.l.b16 %v1086
        %v1906 = vunpack.c.h.b16 %v1086
        %v1907 = vunpack.c.l.b16 %v1087
        %v1908 = vunpack.c.h.b16 %v1087
        %v1909 = vunpack.c.l.b16 %v1088
        %v1910 = vunpack.c.h.b16 %v1088
        %v1911 = vunpack.c.l.b16 %v1089
        %v1912 = vunpack.c.h.b16 %v1089
        %v1913 = vunpack.c.l.b16 %v1090
        %v1914 = vunpack.c.h.b16 %v1090
        %v1915 = vunpack.c.l.b16 %v1091
        %v1916 = vunpack.c.h.b16 %v1091
        %v1917 = vunpack.c.l.b16 %v1092
        %v1918 = vunpack.c.h.b16 %v1092
        %v1919 = vunpack.c.l.b16 %v1093
        %v1920 = vunpack.c.h.b16 %v1093
        %v1921 = vunpack.c.l.b16 %v1094
        %v1922 = vunpack.c.h.b16 %v1094
        %v1923 = vunpack.c.l.b16 %v1095
        %v1924 = vunpack.c.h.b16 %v1095
        %v1925 = vunpack.c.l.b16 %v1096
        %v1926 = vunpack.c.h.b16 %v1096
        %v1927 = vunpack.c.l.b16 %v1097
        %v1928 = vunpack.c.h.b16 %v1097
        %v1929 = vunpack.c.l.b16 %v1098
        %v1930 = vunpack.c.h.b16 %v1098
        %v1931 = vunpack.c.l.b16 %v1099
        %v1932 = vunpack.c.h.b16 %v1099
        %v1933 = vunpack.c.l.b16 %v1100
        %v1934 = vunpack.c.h.b16 %v1100
        %v1935 = vunpack.c.l.b16 %v1101
        %v1936 = vunpack.c.h.b16 %v1101
        %v1937 = vunpack.c.l.b16 %v1102
        %v1938 = vunpack.c.h.b16 %v1102
        %v1939 = vunpack.c.l.b16 %v1103
        %v1940 = vunpack.c.h.b16 %v1103
        %v1941 = vunpack.c.l.b16 %v1104
        %v1942 = vunpack.c.h.b16 %v1104
        %v1943 = vunpack.c.l.b16 %v1105
        %v1944 = vunpack.c.h.b16 %v1105
        %v1945 = vunpack.c.l.b16 %v1106
        %v1946 = vunpack.c.h.b16 %v1106
        %v1947 = vunpack.c.l.b16 %v1107
        %v1948 = vunpack.c.h.b16 %v1107
        %v1949 = vunpack.c.l.b16 %v1108
        %v1950 = vunpack.c.h.b16 %v1108
        %v1951 = vunpack.c.l.b16 %v1109
        %v1952 = vunpack.c.h.b16 %v1109
        %v1953 = vunpack.c.l.b16 %v1110
        %v1954 = vunpack.c.h.b16 %v1110
        %v1955 = vunpack.c.l.b16 %v1111
        %v1956 = vunpack.c.h.b16 %v1111
        %v1957 = vunpack.c.l.b16 %v1112
        %v1958 = vunpack.c.h.b16 %v1112
        %v1959 = vunpack.c.l.b16 %v1113
        %v1960 = vunpack.c.h.b16 %v1113
        %v1961 = vunpack.c.l.b16 %v1114
        %v1962 = vunpack.c.h.b16 %v1114
        %v1963 = vunpack.c.l.b16 %v1115
        %v1964 = vunpack.c.h.b16 %v1115
        %v1965 = vunpack.c.l.b16 %v1116
        %v1966 = vunpack.c.h.b16 %v1116
        %v1967 = vunpack.c.l.b16 %v1117
        %v1968 = vunpack.c.h.b16 %v1117
        %v1969 = vunpack.c.l.b16 %v1118
        %v1970 = vunpack.c.h.b16 %v1118
        %v1971 = vunpack.c.l.b16 %v1119
        %v1972 = vunpack.c.h.b16 %v1119
        %v1973 = vunpack.c.l.b16 %v1120
        %v1974 = vunpack.c.h.b16 %v1120
        %v1975 = vunpack.c.l.b16 %v1121
        %v1976 = vunpack.c.h.b16 %v1121
        %v1977 = vunpack.c.l.b16 %v1122
        %v1978 = vunpack.c.h.b16 %v1122
        %v1979 = vunpack.c.l.b16 %v1123
        %v1980 = vunpack.c.h.b16 %v1123
        %v1981 = vunpack.c.l.b16 %v1124
        %v1982 = vunpack.c.h.b16 %v1124
        %v1983 = vunpack.c.l.b16 %v1125
        %v1984 = vunpack.c.h.b16 %v1125
        %v1985 = vunpack.c.l.b16 %v1126
        %v1986 = vunpack.c.h.b16 %v1126
        %v1987 = vunpack.c.l.b16 %v1127
        %v1988 = vunpack.c.h.b16 %v1127
        %v1989 = vunpack.c.l.b16 %v1128
        %v1990 = vunpack.c.h.b16 %v1128
        %v1991 = vunpack.c.l.b16 %v1129
        %v1992 = vunpack.c.h.b16 %v1129
        %v1993 = vunpack.c.l.b16 %v1130
        %v1994 = vunpack.c.h.b16 %v1130
        %v1995 = vunpack.c.l.b16 %v1131
        %v1996 = vunpack.c.h.b16 %v1131
        %v1997 = vunpack.c.l.b16 %v1132
        %v1998 = vunpack.c.h.b16 %v1132
        %v1999 = vunpack.c.l.b16 %v1133
        %v2000 = vunpack.c.h.b16 %v1133
        %v2001 = vunpack.c.l.b16 %v1134
        %v2002 = vunpack.c.h.b16 %v1134
        %v2003 = vunpack.c.l.b16 %v1135
        %v2004 = vunpack.c.h.b16 %v1135
        %v2005 = vunpack.c.l.b16 %v1136
        %v2006 = vunpack.c.h.b16 %v1136
        %v2007 = vunpack.c.l.b16 %v1137
        %v2008 = vunpack.c.h.b16 %v1137
        %v2009 = vunpack.c.l.b16 %v1138
        %v2010 = vunpack.c.h.b16 %v1138
        %v2011 = vunpack.c.l.b16 %v1139
        %v2012 = vunpack.c.h.b16 %v1139
        %v2013 = vunpack.c.l.b16 %v1140
        %v2014 = vunpack.c.h.b16 %v1140
        %v2015 = vunpack.c.l.b16 %v1141
        %v2016 = vunpack.c.h.b16 %v1141
        %v2017 = vunpack.c.l.b16 %v1142
        %v2018 = vunpack.c.h.b16 %v1142
        %v2019 = vunpack.c.l.b16 %v1143
        %v2020 = vunpack.c.h.b16 %v1143
        %v2021 = vunpack.c.l.b16 %v1144
        %v2022 = vunpack.c.h.b16 %v1144
        %v2023 = vunpack.c.l.b16 %v1145
        %v2024 = vunpack.c.h.b16 %v1145
        %v2025 = vunpack.c.l.b16 %v1146
        %v2026 = vunpack.c.h.b16 %v1146
        %v2027 = vunpack.c.l.b16 %v1147
        %v2028 = vunpack.c.h.b16 %v1147
        %v2029 = vunpack.c.l.b16 %v1148
        %v2030 = vunpack.c.h.b16 %v1148
        %v2031 = vunpack.c.l.b16 %v1149
        %v2032 = vunpack.c.h.b16 %v1149
        %v2033 = vunpack.c.l.b16 %v1150
        %v2034 = vunpack.c.h.b16 %v1150
        %v2035 = vunpack.c.l.b16 %v1151
        %v2036 = vunpack.c.h.b16 %v1151
        %v2037 = vunpack.c.l.b16 %v1152
        %v2038 = vunpack.c.h.b16 %v1152
        %v2039 = vunpack.c.l.b16 %v1153
        %v2040 = vunpack.c.h.b16 %v1153
        %v2041 = vunpack.c.l.b16 %v1154
        %v2042 = vunpack.c.h.b16 %v1154
        %v2043 = vunpack.c.l.b16 %v1155
        %v2044 = vunpack.c.h.b16 %v1155
        %v2045 = vunpack.c.l.b16 %v1156
        %v2046 = vunpack.c.h.b16 %v1156
        %v2047 = vunpack.c.l.b16 %v1157
        %v2048 = vunpack.c.h.b16 %v1157
        %v2049 = vunpack.c.l.b16 %v1158
        %v2050 = vunpack.c.h.b16 %v1158
        %v2051 = vunpack.c.l.b16 %v1159
        %v2052 = vunpack.c.h.b16 %v1159
        %v2053 = vunpack.c.l.b16 %v1160
        %v2054 = vunpack.c.h.b16 %v1160
        %v2055 = vunpack.c.l.b16 %v1161
        %v2056 = vunpack.c.h.b16 %v1161
        %v2057 = vunpack.c.l.b16 %v1162
        %v2058 = vunpack.c.h.b16 %v1162
        %v2059 = vpack.c.b16 %v1489, %v1483
        %v2060 = vpack.c.b16 %v1490, %v1484
        %v2061 = vpack.c.b16 %v1491, %v1485
        %v2062 = vpack.c.b16 %v1492, %v1486
        %v2063 = vpack.c.b16 %v1493, %v1487
        %v2064 = vpack.c.b16 %v1494, %v1488
        %v2065 = vpack.c.b16 %v1501, %v1495
        %v2066 = vpack.c.b16 %v1502, %v1496
        %v2067 = vpack.c.b16 %v1503, %v1497
        %v2068 = vpack.c.b16 %v1504, %v1498
        %v2069 = vpack.c.b16 %v1505, %v1499
        %v2070 = vpack.c.b16 %v1506, %v1500
        %v2071 = vpack.c.b16 %v1513, %v1507
        %v2072 = vpack.c.b16 %v1514, %v1508
        %v2073 = vpack.c.b16 %v1515, %v1509
        %v2074 = vpack.c.b16 %v1516, %v1510
        %v2075 = vpack.c.b16 %v1517, %v1511
        %v2076 = vpack.c.b16 %v1518, %v1512
        %v2077 = vpack.c.b16 %v1525, %v1519
        %v2078 = vpack.c.b16 %v1526, %v1520
        %v2079 = vpack.c.b16 %v1527, %v1521
        %v2080 = vpack.c.b16 %v1528, %v1522
        %v2081 = vpack.c.b16 %v1529, %v1523
        %v2082 = vpack.c.b16 %v1530, %v1524
        %v2083 = vpack.c.b16 %v1537, %v1531
        %v2084 = vpack.c.b16 %v1538, %v1532
        %v2085 = vpack.c.b16 %v1539, %v1533
        %v2086 = vpack.c.b16 %v1540, %v1534
        %v2087 = vpack.c.b16 %v1541, %v1535
        %v2088 = vpack.c.b16 %v1542, %v1536
        %v2089 = vpack.c.b16 %v1549, %v1543
        %v2090 = vpack.c.b16 %v1550, %v1544
        %v2091 = vpack.c.b16 %v1551, %v1545
        %v2092 = vpack.c.b16 %v1552, %v1546
        %v2093 = vpack.c.b16 %v1553, %v1547
        %v2094 = vpack.c.b16 %v1554, %v1548
        %v2095 = vpack.c.b16 %v1561, %v1555
        %v2096 = vpack.c.b16 %v1562, %v1556
        %v2097 = vpack.c.b16 %v1563, %v1557
        %v2098 = vpack.c.b16 %v1564, %v1558
        %v2099 = vpack.c.b16 %v1565, %v1559
        %v2100 = vpack.c.b16 %v1566, %v1560
        %v2101 = vpack.c.b16 %v1573, %v1567
        %v2102 = vpack.c.b16 %v1574, %v1568
        %v2103 = vpack.c.b16 %v1575, %v1569
        %v2104 = vpack.c.b16 %v1576, %v1570
        %v2105 = vpack.c.b16 %v1577, %v1571
        %v2106 = vpack.c.b16 %v1578, %v1572
        %v2107 = vpack.c.b16 %v1585, %v1579
        %v2108 = vpack.c.b16 %v1586, %v1580
        %v2109 = vpack.c.b16 %v1587, %v1581
        %v2110 = vpack.c.b16 %v1588, %v1582
        %v2111 = vpack.c.b16 %v1589, %v1583
        %v2112 = vpack.c.b16 %v1590, %v1584
        %v2113 = vpack.c.b16 %v1597, %v1591
        %v2114 = vpack.c.b16 %v1598, %v1592
        %v2115 = vpack.c.b16 %v1599, %v1593
        %v2116 = vpack.c.b16 %v1600, %v1594
        %v2117 = vpack.c.b16 %v1601, %v1595
        %v2118 = vpack.c.b16 %v1602, %v1596
        %v2119 = vpack.c.b16 %v1609, %v1603
        %v2120 = vpack.c.b16 %v1610, %v1604
        %v2121 = vpack.c.b16 %v1611, %v1605
        %v2122 = vpack.c.b16 %v1612, %v1606
        %v2123 = vpack.c.b16 %v1613, %v1607
        %v2124 = vpack.c.b16 %v1614, %v1608
        %v2125 = vpack.c.b16 %v1621, %v1615
        %v2126 = vpack.c.b16 %v1622, %v1616
        %v2127 = vpack.c.b16 %v1623, %v1617
        %v2128 = vpack.c.b16 %v1624, %v1618
        %v2129 = vpack.c.b16 %v1625, %v1619
        %v2130 = vpack.c.b16 %v1626, %v1620
        %v2131 = vpack.c.b16 %v1633, %v1627
        %v2132 = vpack.c.b16 %v1634, %v1628
        %v2133 = vpack.c.b16 %v1635, %v1629
        %v2134 = vpack.c.b16 %v1636, %v1630
        %v2135 = vpack.c.b16 %v1637, %v1631
        %v2136 = vpack.c.b16 %v1638, %v1632
        %v2137 = vpack.c.b16 %v1645, %v1639
        %v2138 = vpack.c.b16 %v1646, %v1640
        %v2139 = vpack.c.b16 %v1647, %v1641
        %v2140 = vpack.c.b16 %v1648, %v1642
        %v2141 = vpack.c.b16 %v1649, %v1643
        %v2142 = vpack.c.b16 %v1650, %v1644
        %v2143 = vpack.c.b16 %v1657, %v1651
        %v2144 = vpack.c.b16 %v1658, %v1652
        %v2145 = vpack.c.b16 %v1659, %v1653
        %v2146 = vpack.c.b16 %v1660, %v1654
        %v2147 = vpack.c.b16 %v1661, %v1655
        %v2148 = vpack.c.b16 %v1662, %v1656
        %v2149 = vpack.c.b16 %v1669, %v1663
        %v2150 = vpack.c.b16 %v1670, %v1664
        %v2151 = vpack.c.b16 %v1671, %v1665
        %v2152 = vpack.c.b16 %v1672, %v1666
        %v2153 = vpack.c.b16 %v1673, %v1667
        %v2154 = vpack.c.b16 %v1674, %v1668
        %v2155 = vpack.c.b16 %v1681, %v1675
        %v2156 = vpack.c.b16 %v1682, %v1676
        %v2157 = vpack.c.b16 %v1683, %v1677
        %v2158 = vpack.c.b16 %v1684, %v1678
        %v2159 = vpack.c.b16 %v1685, %v1679
        %v2160 = vpack.c.b16 %v1686, %v1680
        %v2161 = vpack.c.b16 %v1693, %v1687
        %v2162 = vpack.c.b16 %v1694, %v1688
        %v2163 = vpack.c.b16 %v1695, %v1689
        %v2164 = vpack.c.b16 %v1696, %v1690
        %v2165 = vpack.c.b16 %v1697, %v1691
        %v2166 = vpack.c.b16 %v1698, %v1692
        %v2167 = vpack.c.b16 %v1705, %v1699
        %v2168 = vpack.c.b16 %v1706, %v1700
        %v2169 = vpack.c.b16 %v1707, %v1701
        %v2170 = vpack.c.b16 %v1708, %v1702
        %v2171 = vpack.c.b16 %v1709, %v1703
        %v2172 = vpack.c.b16 %v1710, %v1704
        %v2173 = vpack.c.b16 %v1717, %v1711
        %v2174 = vpack.c.b16 %v1718, %v1712
        %v2175 = vpack.c.b16 %v1719, %v1713
        %v2176 = vpack.c.b16 %v1720, %v1714
        %v2177 = vpack.c.b16 %v1721, %v1715
        %v2178 = vpack.c.b16 %v1722, %v1716
        %v2179 = vpack.c.b16 %v1729, %v1723
        %v2180 = vpack.c.b16 %v1730, %v1724
        %v2181 = vpack.c.b16 %v1731, %v1725
        %v2182 = vpack.c.b16 %v1732, %v1726
        %v2183 = vpack.c.b16 %v1733, %v1727
        %v2184 = vpack.c.b16 %v1734, %v1728
        %v2185 = vpack.c.b16 %v1741, %v1735
        %v2186 = vpack.c.b16 %v1742, %v1736
        %v2187 = vpack.c.b16 %v1743, %v1737
        %v2188 = vpack.c.b16 %v1744, %v1738
        %v2189 = vpack.c.b16 %v1745, %v1739
        %v2190 = vpack.c.b16 %v1746, %v1740
        %v2191 = vpack.c.b16 %v1753, %v1747
        %v2192 = vpack.c.b16 %v1754, %v1748
        %v2193 = vpack.c.b16 %v1755, %v1749
        %v2194 = vpack.c.b16 %v1756, %v1750
        %v2195 = vpack.c.b16 %v1757, %v1751
        %v2196 = vpack.c.b16 %v1758, %v1752
        %v2197 = vpack.c.b16 %v1765, %v1759
        %v2198 = vpack.c.b16 %v1766, %v1760
        %v2199 = vpack.c.b16 %v1767, %v1761
        %v2200 = vpack.c.b16 %v1768, %v1762
        %v2201 = vpack.c.b16 %v1769, %v1763
        %v2202 = vpack.c.b16 %v1770, %v1764
        %v2203 = vpack.c.b16 %v1777, %v1771
        %v2204 = vpack.c.b16 %v1778, %v1772
        %v2205 = vpack.c.b16 %v1779, %v1773
        %v2206 = vpack.c.b16 %v1780, %v1774
        %v2207 = vpack.c.b16 %v1781, %v1775
        %v2208 = vpack.c.b16 %v1782, %v1776
        %v2209 = vpack.c.b16 %v1789, %v1783
        %v2210 = vpack.c.b16 %v1790, %v1784
        %v2211 = vpack.c.b16 %v1791, %v1785
        %v2212 = vpack.c.b16 %v1792, %v1786
        %v2213 = vpack.c.b16 %v1793, %v1787
        %v2214 = vpack.c.b16 %v1794, %v1788
        %v2215 = vpack.c.b16 %v1801, %v1795
        %v2216 = vpack.c.b16 %v1802, %v1796
        %v2217 = vpack.c.b16 %v1803, %v1797
        %v2218 = vpack.c.b16 %v1804, %v1798
        %v2219 = vpack.c.b16 %v1805, %v1799
        %v2220 = vpack.c.b16 %v1806, %v1800
        %v2221 = vpack.c.b16 %v1813, %v1807
        %v2222 = vpack.c.b16 %v1814, %v1808
        %v2223 = vpack.c.b16 %v1815, %v1809
        %v2224 = vpack.c.b16 %v1816, %v1810
        %v2225 = vpack.c.b16 %v1817, %v1811
        %v2226 = vpack.c.b16 %v1818, %v1812
        %v2227 = vpack.c.b16 %v1825, %v1819
        %v2228 = vpack.c.b16 %v1826, %v1820
        %v2229 = vpack.c.b16 %v1827, %v1821
        %v2230 = vpack.c.b16 %v1828, %v1822
        %v2231 = vpack.c.b16 %v1829, %v1823
        %v2232 = vpack.c.b16 %v1830, %v1824
        %v2233 = vpack.c.b16 %v1837, %v1831
        %v2234 = vpack.c.b16 %v1838, %v1832
        %v2235 = vpack.c.b16 %v1839, %v1833
        %v2236 = vpack.c.b16 %v1840, %v1834
        %v2237 = vpack.c.b16 %v1841, %v1835
        %v2238 = vpack.c.b16 %v1842, %v1836
        %v2239 = vpack.c.b16 %v1849, %v1843
        %v2240 = vpack.c.b16 %v1850, %v1844
        %v2241 = vpack.c.b16 %v1851, %v1845
        %v2242 = vpack.c.b16 %v1852, %v1846
        %v2243 = vpack.c.b16 %v1853, %v1847
        %v2244 = vpack.c.b16 %v1854, %v1848
        %v2245 = vpack.c.b16 %v1861, %v1855
        %v2246 = vpack.c.b16 %v1862, %v1856
        %v2247 = vpack.c.b16 %v1863, %v1857
        %v2248 = vpack.c.b16 %v1864, %v1858
        %v2249 = vpack.c.b16 %v1865, %v1859
        %v2250 = vpack.c.b16 %v1866, %v1860
        %v2251 = vpack.c.b16 %v1873, %v1867
        %v2252 = vpack.c.b16 %v1874, %v1868
        %v2253 = vpack.c.b16 %v1875, %v1869
        %v2254 = vpack.c.b16 %v1876, %v1870
        %v2255 = vpack.c.b16 %v1877, %v1871
        %v2256 = vpack.c.b16 %v1878, %v1872
        %v2257 = vpack.c.b16 %v1885, %v1879
        %v2258 = vpack.c.b16 %v1886, %v1880
        %v2259 = vpack.c.b16 %v1887, %v1881
        %v2260 = vpack.c.b16 %v1888, %v1882
        %v2261 = vpack.c.b16 %v1889, %v1883
        %v2262 = vpack.c.b16 %v1890, %v1884
        %v2263 = vpack.c.b16 %v1897, %v1891
        %v2264 = vpack.c.b16 %v1898, %v1892
        %v2265 = vpack.c.b16 %v1899, %v1893
        %v2266 = vpack.c.b16 %v1900, %v1894
        %v2267 = vpack.c.b16 %v1901, %v1895
        %v2268 = vpack.c.b16 %v1902, %v1896
        %v2269 = vpack.c.b16 %v1909, %v1903
        %v2270 = vpack.c.b16 %v1910, %v1904
        %v2271 = vpack.c.b16 %v1911, %v1905
        %v2272 = vpack.c.b16 %v1912, %v1906
        %v2273 = vpack.c.b16 %v1913, %v1907
        %v2274 = vpack.c.b16 %v1914, %v1908
        %v2275 = vpack.c.b16 %v1921, %v1915
        %v2276 = vpack.c.b16 %v1922, %v1916
        %v2277 = vpack.c.b16 %v1923, %v1917
        %v2278 = vpack.c.b16 %v1924, %v1918
        %v2279 = vpack.c.b16 %v1925, %v1919
        %v2280 = vpack.c.b16 %v1926, %v1920
        %v2281 = vpack.c.b16 %v1933, %v1927
        %v2282 = vpack.c.b16 %v1934, %v1928
        %v2283 = vpack.c.b16 %v1935, %v1929
        %v2284 = vpack.c.b16 %v1936, %v1930
        %v2285 = vpack.c.b16 %v1937, %v1931
        %v2286 = vpack.c.b16 %v1938, %v1932
        %v2287 = vpack.c.b16 %v1945, %v1939
        %v2288 = vpack.c.b16 %v1946, %v1940
        %v2289 = vpack.c.b16 %v1947, %v1941
        %v2290 = vpack.c.b16 %v1948, %v1942
        %v2291 = vpack.c.b16 %v1949, %v1943
        %v2292 = vpack.c.b16 %v1950, %v1944
        %v2293 = vpack.c.b16 %v1957, %v1951
        %v2294 = vpack.c.b16 %v1958, %v1952
        %v2295 = vpack.c.b16 %v1959, %v1953
        %v2296 = vpack.c.b16 %v1960, %v1954
        %v2297 = vpack.c.b16 %v1961, %v1955
        %v2298 = vpack.c.b16 %v1962, %v1956
        %v2299 = vpack.c.b16 %v1969, %v1963
        %v2300 = vpack.c.b16 %v1970, %v1964
        %v2301 = vpack.c.b16 %v1971, %v1965
        %v2302 = vpack.c.b16 %v1972, %v1966
        %v2303 = vpack.c.b16 %v1973, %v1967
        %v2304 = vpack.c.b16 %v1974, %v1968
        %v2305 = vpack.c.b16 %v1981, %v1975
        %v2306 = vpack.c.b16 %v1982, %v1976
        %v2307 = vpack.c.b16 %v1983, %v1977
        %v2308 = vpack.c.b16 %v1984, %v1978
        %v2309 = vpack.c.b16 %v1985, %v1979
        %v2310 = vpack.c.b16 %v1986, %v1980
        %v2311 = vpack.c.b16 %v1993, %v1987
        %v2312 = vpack.c.b16 %v1994, %v1988
        %v2313 = vpack.c.b16 %v1995, %v1989
        %v2314 = vpack.c.b16 %v1996, %v1990
        %v2315 = vpack.c.b16 %v1997, %v1991
        %v2316 = vpack.c.b16 %v1998, %v1992
        %v2317 = vpack.c.b16 %v2005, %v1999
        %v2318 = vpack.c.b16 %v2006, %v2000
        %v2319 = vpack.c.b16 %v2007, %v2001
        %v2320 = vpack.c.b16 %v2008, %v2002
        %v2321 = vpack.c.b16 %v2009, %v2003
        %v2322 = vpack.c.b16 %v2010, %v2004
        %v2323 = vpack.c.b16 %v2017, %v2011
        %v2324 = vpack.c.b16 %v2018, %v2012
        %v2325 = vpack.c.b16 %v2019, %v2013
        %v2326 = vpack.c.b16 %v2020, %v2014
        %v2327 = vpack.c.b16 %v2021, %v2015
        %v2328 = vpack.c.b16 %v2022, %v2016
        %v2329 = vpack.c.b16 %v2029, %v2023
        %v2330 = vpack.c.b16 %v2030, %v2024
        %v2331 = vpack.c.b16 %v2031, %v2025
        %v2332 = vpack.c.b16 %v2032, %v2026
        %v2333 = vpack.c.b16 %v2033, %v2027
        %v2334 = vpack.c.b16 %v2034, %v2028
        %v2335 = vpack.c.b16 %v2041, %v2035
        %v2336 = vpack.c.b16 %v2042, %v2036
        %v2337 = vpack.c.b16 %v2043, %v2037
        %v2338 = vpack.c.b16 %v2044, %v2038
        %v2339 = vpack.c.b16 %v2045, %v2039
        %v2340 = vpack.c.b16 %v2046, %v2040
        %v2341 = vpack.c.b16 %v2053, %v2047
        %v2342 = vpack.c.b16 %v2054, %v2048
        %v2343 = vpack.c.b16 %v2055, %v2049
        %v2344 = vpack.c.b16 %v2056, %v2050
        %v2345 = vpack.c.b16 %v2057, %v2051
        %v2346 = vpack.c.b16 %v2058, %v2052
        %2635 = vmatprep.subr.bf16.mxu0 %v2102
        %2636 = vmatpush1.bf16.msra.mxu0 %v2101
        %2637 = vmatprep.subr.bf16.mxu0 %v2096
        %2638 = vmatpush1.bf16.msra.mxu0 %v2095
        %2639 = vmatprep.subr.bf16.mxu0 %v2090
        %2640 = vmatpush1.bf16.msra.mxu0 %v2089
        %2641 = vmatprep.subr.bf16.mxu0 %v2084
        %2642 = vmatpush1.bf16.msra.mxu0 %v2083
        %2643 = vmatprep.subr.bf16.mxu0 %v2078
        %2644 = vmatpush1.bf16.msra.mxu0 %v2077
        %2645 = vmatprep.subr.bf16.mxu0 %v2072
        %2646 = vmatpush1.bf16.msra.mxu0 %v2071
        %2647 = vmatprep.subr.bf16.mxu0 %v2066
        %2648 = vmatpush1.bf16.msra.mxu0 %v2065
        %2649 = vmatprep.subr.bf16.mxu0 %v2060
        %2650 = vmatpush1.bf16.msra.mxu0 %v2059
        %2651 = vmatprep.subr.bf16.mxu0 %v2150
        %2652 = vmatpush2.bf16.msra.mxu0 %v2149
        %2653 = vmatprep.subr.bf16.mxu0 %v2144
        %2654 = vmatpush2.bf16.msra.mxu0 %v2143
        %2655 = vmatprep.subr.bf16.mxu0 %v2138
        %2656 = vmatpush2.bf16.msra.mxu0 %v2137
        %2657 = vmatprep.subr.bf16.mxu0 %v2132
        %2658 = vmatpush2.bf16.msra.mxu0 %v2131
        %2659 = vmatprep.subr.bf16.mxu0 %v2126
        %2660 = vmatpush2.bf16.msra.mxu0 %v2125
        %2661 = vmatprep.subr.bf16.mxu0 %v2120
        %2662 = vmatpush2.bf16.msra.mxu0 %v2119
        %2663 = vmatprep.subr.bf16.mxu0 %v2114
        %2664 = vmatpush2.bf16.msra.mxu0 %v2113
        %2665 = vmatprep.subr.bf16.mxu0 %v2108
        %2666 = vmatpush2.bf16.msra.mxu0 %v2107
        %2667 = vmatprep.mubr.bf16.mxu0 %v852
        %2668 = vmatmul.mubr.bf16.gmra.mxu0 %v851
        %v2669 = vpop.f32.mrf.mxu0
        %v2670 = vadd.f32 %v1168, %v2669
        %v2671 = vpop.f32.mrf.mxu0
        %v2672 = vadd.f32 %v1172, %v2671
        %v2673 = vpop.f32.mrf.mxu0
        %v2674 = vadd.f32 %v1168, %v2673
        %v2675 = vpop.f32.mrf.mxu0
        %v2676 = vadd.f32 %v1172, %v2675
        %2677 = vmatprep.mubr.bf16.mxu0 %v858
        %2678 = vmatmul.mubr.bf16.gmra.mxu0 %v857
        %v2679 = vpop.f32.mrf.mxu0
        %v2680 = vadd.f32 %v1168, %v2679
        %v2681 = vpop.f32.mrf.mxu0
        %v2682 = vadd.f32 %v1172, %v2681
        %v2683 = vpop.f32.mrf.mxu0
        %v2684 = vadd.f32 %v1168, %v2683
        %v2685 = vpop.f32.mrf.mxu0
        %v2686 = vadd.f32 %v1172, %v2685
        %2687 = vmatprep.mubr.bf16.mxu0 %v864
        %2688 = vmatmul.mubr.bf16.gmra.mxu0 %v863
        %v2689 = vpop.f32.mrf.mxu0
        %v2690 = vadd.f32 %v1168, %v2689
        %v2691 = vpop.f32.mrf.mxu0
        %v2692 = vadd.f32 %v1172, %v2691
        %v2693 = vpop.f32.mrf.mxu0
        %v2694 = vadd.f32 %v1168, %v2693
        %v2695 = vpop.f32.mrf.mxu0
        %v2696 = vadd.f32 %v1172, %v2695
        %2697 = vmatprep.mubr.bf16.mxu0 %v870
        %2698 = vmatmul.mubr.bf16.gmra.mxu0 %v869
        %v2699 = vpop.f32.mrf.mxu0
        %v2700 = vadd.f32 %v1168, %v2699
        %v2701 = vpop.f32.mrf.mxu0
        %v2702 = vadd.f32 %v1172, %v2701
        %v2703 = vpop.f32.mrf.mxu0
        %v2704 = vadd.f32 %v1168, %v2703
        %v2705 = vpop.f32.mrf.mxu0
        %v2706 = vadd.f32 %v1172, %v2705
        %2707 = vdwg.mxu0
        %2708 = vmatprep.subr.bf16.mxu0 %v2198
        %2709 = vmatpush1.bf16.msra.mxu0 %v2197
        %2710 = vmatprep.subr.bf16.mxu0 %v2192
        %2711 = vmatpush1.bf16.msra.mxu0 %v2191
        %2712 = vmatprep.subr.bf16.mxu0 %v2186
        %2713 = vmatpush1.bf16.msra.mxu0 %v2185
        %2714 = vmatprep.subr.bf16.mxu0 %v2180
        %2715 = vmatpush1.bf16.msra.mxu0 %v2179
        %2716 = vmatprep.subr.bf16.mxu0 %v2174
        %2717 = vmatpush1.bf16.msra.mxu0 %v2173
        %2718 = vmatprep.subr.bf16.mxu0 %v2168
        %2719 = vmatpush1.bf16.msra.mxu0 %v2167
        %2720 = vmatprep.subr.bf16.mxu0 %v2162
        %2721 = vmatpush1.bf16.msra.mxu0 %v2161
        %2722 = vmatprep.subr.bf16.mxu0 %v2156
        %2723 = vmatpush1.bf16.msra.mxu0 %v2155
        %2724 = vmatprep.subr.bf16.mxu0 %v2246
        %2725 = vmatpush2.bf16.msra.mxu0 %v2245
        %2726 = vmatprep.subr.bf16.mxu0 %v2240
        %2727 = vmatpush2.bf16.msra.mxu0 %v2239
        %2728 = vmatprep.subr.bf16.mxu0 %v2234
        %2729 = vmatpush2.bf16.msra.mxu0 %v2233
        %2730 = vmatprep.subr.bf16.mxu0 %v2228
        %2731 = vmatpush2.bf16.msra.mxu0 %v2227
        %2732 = vmatprep.subr.bf16.mxu0 %v2222
        %2733 = vmatpush2.bf16.msra.mxu0 %v2221
        %2734 = vmatprep.subr.bf16.mxu0 %v2216
        %2735 = vmatpush2.bf16.msra.mxu0 %v2215
        %2736 = vmatprep.subr.bf16.mxu0 %v2210
        %2737 = vmatpush2.bf16.msra.mxu0 %v2209
        %2738 = vmatprep.subr.bf16.mxu0 %v2204
        %2739 = vmatpush2.bf16.msra.mxu0 %v2203
        %2740 = vmatprep.mubr.bf16.mxu0 %v854
        %2741 = vmatmul.mubr.bf16.gmra.mxu0 %v853
        %v2742 = vpop.f32.mrf.mxu0
        %v2743 = vadd.f32 %v2670, %v2742
        %v2744 = vpop.f32.mrf.mxu0
        %v2745 = vadd.f32 %v2672, %v2744
        %v2746 = vpop.f32.mrf.mxu0
        %v2747 = vadd.f32 %v2674, %v2746
        %v2748 = vpop.f32.mrf.mxu0
        %v2749 = vadd.f32 %v2676, %v2748
        %2750 = vmatprep.mubr.bf16.mxu0 %v860
        %2751 = vmatmul.mubr.bf16.gmra.mxu0 %v859
        %v2752 = vpop.f32.mrf.mxu0
        %v2753 = vadd.f32 %v2680, %v2752
        %v2754 = vpop.f32.mrf.mxu0
        %v2755 = vadd.f32 %v2682, %v2754
        %v2756 = vpop.f32.mrf.mxu0
        %v2757 = vadd.f32 %v2684, %v2756
        %v2758 = vpop.f32.mrf.mxu0
        %v2759 = vadd.f32 %v2686, %v2758
        %2760 = vmatprep.mubr.bf16.mxu0 %v866
        %2761 = vmatmul.mubr.bf16.gmra.mxu0 %v865
        %v2762 = vpop.f32.mrf.mxu0
        %v2763 = vadd.f32 %v2690, %v2762
        %v2764 = vpop.f32.mrf.mxu0
        %v2765 = vadd.f32 %v2692, %v2764
        %v2766 = vpop.f32.mrf.mxu0
        %v2767 = vadd.f32 %v2694, %v2766
        %v2768 = vpop.f32.mrf.mxu0
        %v2769 = vadd.f32 %v2696, %v2768
        %2770 = vmatprep.mubr.bf16.mxu0 %v872
        %2771 = vmatmul.mubr.bf16.gmra.mxu0 %v871
        %v2772 = vpop.f32.mrf.mxu0
        %v2773 = vadd.f32 %v2700, %v2772
        %v2774 = vpop.f32.mrf.mxu0
        %v2775 = vadd.f32 %v2702, %v2774
        %v2776 = vpop.f32.mrf.mxu0
        %v2777 = vadd.f32 %v2704, %v2776
        %v2778 = vpop.f32.mrf.mxu0
        %v2779 = vadd.f32 %v2706, %v2778
        %2780 = vdwg.mxu0
        %2781 = vmatprep.subr.bf16.mxu0 %v2294
        %2782 = vmatpush1.bf16.msra.mxu0 %v2293
        %2783 = vmatprep.subr.bf16.mxu0 %v2288
        %2784 = vmatpush1.bf16.msra.mxu0 %v2287
        %2785 = vmatprep.subr.bf16.mxu0 %v2282
        %2786 = vmatpush1.bf16.msra.mxu0 %v2281
        %2787 = vmatprep.subr.bf16.mxu0 %v2276
        %2788 = vmatpush1.bf16.msra.mxu0 %v2275
        %2789 = vmatprep.subr.bf16.mxu0 %v2270
        %2790 = vmatpush1.bf16.msra.mxu0 %v2269
        %2791 = vmatprep.subr.bf16.mxu0 %v2264
        %2792 = vmatpush1.bf16.msra.mxu0 %v2263
        %2793 = vmatprep.subr.bf16.mxu0 %v2258
        %2794 = vmatpush1.bf16.msra.mxu0 %v2257
        %2795 = vmatprep.subr.bf16.mxu0 %v2252
        %2796 = vmatpush1.bf16.msra.mxu0 %v2251
        %2797 = vmatprep.subr.bf16.mxu0 %v2342
        %2798 = vmatpush2.bf16.msra.mxu0 %v2341
        %2799 = vmatprep.subr.bf16.mxu0 %v2336
        %2800 = vmatpush2.bf16.msra.mxu0 %v2335
        %2801 = vmatprep.subr.bf16.mxu0 %v2330
        %2802 = vmatpush2.bf16.msra.mxu0 %v2329
        %2803 = vmatprep.subr.bf16.mxu0 %v2324
        %2804 = vmatpush2.bf16.msra.mxu0 %v2323
        %2805 = vmatprep.subr.bf16.mxu0 %v2318
        %2806 = vmatpush2.bf16.msra.mxu0 %v2317
        %2807 = vmatprep.subr.bf16.mxu0 %v2312
        %2808 = vmatpush2.bf16.msra.mxu0 %v2311
        %2809 = vmatprep.subr.bf16.mxu0 %v2306
        %2810 = vmatpush2.bf16.msra.mxu0 %v2305
        %2811 = vmatprep.subr.bf16.mxu0 %v2300
        %2812 = vmatpush2.bf16.msra.mxu0 %v2299
        %2813 = vmatprep.mubr.bf16.mxu0 %v856
        %2814 = vmatmul.mubr.bf16.gmra.mxu0 %v855
        %v2815 = vpop.f32.mrf.mxu0
        %v2816 = vadd.f32 %v2743, %v2815
        %v2817 = vpop.f32.mrf.mxu0
        %v2818 = vadd.f32 %v2745, %v2817
        %v2819 = vpop.f32.mrf.mxu0
        %v2820 = vadd.f32 %v2747, %v2819
        %v2821 = vpop.f32.mrf.mxu0
        %v2822 = vadd.f32 %v2749, %v2821
        %2823 = vmatprep.mubr.bf16.mxu0 %v862
        %2824 = vmatmul.mubr.bf16.gmra.mxu0 %v861
        %v2825 = vpop.f32.mrf.mxu0
        %v2826 = vadd.f32 %v2753, %v2825
        %v2827 = vpop.f32.mrf.mxu0
        %v2828 = vadd.f32 %v2755, %v2827
        %v2829 = vpop.f32.mrf.mxu0
        %v2830 = vadd.f32 %v2757, %v2829
        %v2831 = vpop.f32.mrf.mxu0
        %v2832 = vadd.f32 %v2759, %v2831
        %2833 = vmatprep.mubr.bf16.mxu0 %v868
        %2834 = vmatmul.mubr.bf16.gmra.mxu0 %v867
        %v2835 = vpop.f32.mrf.mxu0
        %v2836 = vadd.f32 %v2763, %v2835
        %v2837 = vpop.f32.mrf.mxu0
        %v2838 = vadd.f32 %v2765, %v2837
        %v2839 = vpop.f32.mrf.mxu0
        %v2840 = vadd.f32 %v2767, %v2839
        %v2841 = vpop.f32.mrf.mxu0
        %v2842 = vadd.f32 %v2769, %v2841
        %2843 = vmatprep.mubr.bf16.mxu0 %v874
        %2844 = vmatmul.mubr.bf16.gmra.mxu0 %v873
        %v2845 = vpop.f32.mrf.mxu0
        %v2846 = vadd.f32 %v2773, %v2845
        %v2847 = vpop.f32.mrf.mxu0
        %v2848 = vadd.f32 %v2775, %v2847
        %v2849 = vpop.f32.mrf.mxu0
        %v2850 = vadd.f32 %v2777, %v2849
        %v2851 = vpop.f32.mrf.mxu0
        %v2852 = vadd.f32 %v2779, %v2851
        %2853 = vdwg.mxu0
        %2854 = vmatprep.subr.bf16.mxu0 %v2104
        %2855 = vmatpush1.bf16.msra.mxu0 %v2103
        %2856 = vmatprep.subr.bf16.mxu0 %v2098
        %2857 = vmatpush1.bf16.msra.mxu0 %v2097
        %2858 = vmatprep.subr.bf16.mxu0 %v2092
        %2859 = vmatpush1.bf16.msra.mxu0 %v2091
        %2860 = vmatprep.subr.bf16.mxu0 %v2086
        %2861 = vmatpush1.bf16.msra.mxu0 %v2085
        %2862 = vmatprep.subr.bf16.mxu0 %v2080
        %2863 = vmatpush1.bf16.msra.mxu0 %v2079
        %2864 = vmatprep.subr.bf16.mxu0 %v2074
        %2865 = vmatpush1.bf16.msra.mxu0 %v2073
        %2866 = vmatprep.subr.bf16.mxu0 %v2068
        %2867 = vmatpush1.bf16.msra.mxu0 %v2067
        %2868 = vmatprep.subr.bf16.mxu0 %v2062
        %2869 = vmatpush1.bf16.msra.mxu0 %v2061
        %2870 = vmatprep.subr.bf16.mxu0 %v2152
        %2871 = vmatpush2.bf16.msra.mxu0 %v2151
        %2872 = vmatprep.subr.bf16.mxu0 %v2146
        %2873 = vmatpush2.bf16.msra.mxu0 %v2145
        %2874 = vmatprep.subr.bf16.mxu0 %v2140
        %2875 = vmatpush2.bf16.msra.mxu0 %v2139
        %2876 = vmatprep.subr.bf16.mxu0 %v2134
        %2877 = vmatpush2.bf16.msra.mxu0 %v2133
        %2878 = vmatprep.subr.bf16.mxu0 %v2128
        %2879 = vmatpush2.bf16.msra.mxu0 %v2127
        %2880 = vmatprep.subr.bf16.mxu0 %v2122
        %2881 = vmatpush2.bf16.msra.mxu0 %v2121
        %2882 = vmatprep.subr.bf16.mxu0 %v2116
        %2883 = vmatpush2.bf16.msra.mxu0 %v2115
        %2884 = vmatprep.subr.bf16.mxu0 %v2110
        %2885 = vmatpush2.bf16.msra.mxu0 %v2109
        %2886 = vmatprep.mubr.bf16.mxu0 %v852
        %2887 = vmatmul.mubr.bf16.gmra.mxu0 %v851
        %v2888 = vpop.f32.mrf.mxu0
        %v2889 = vadd.f32 %v1176, %v2888
        %v2890 = vpop.f32.mrf.mxu0
        %v2891 = vadd.f32 %v1180, %v2890
        %v2892 = vpop.f32.mrf.mxu0
        %v2893 = vadd.f32 %v1176, %v2892
        %v2894 = vpop.f32.mrf.mxu0
        %v2895 = vadd.f32 %v1180, %v2894
        %2896 = vmatprep.mubr.bf16.mxu0 %v858
        %2897 = vmatmul.mubr.bf16.gmra.mxu0 %v857
        %v2898 = vpop.f32.mrf.mxu0
        %v2899 = vadd.f32 %v1176, %v2898
        %v2900 = vpop.f32.mrf.mxu0
        %v2901 = vadd.f32 %v1180, %v2900
        %v2902 = vpop.f32.mrf.mxu0
        %v2903 = vadd.f32 %v1176, %v2902
        %v2904 = vpop.f32.mrf.mxu0
        %v2905 = vadd.f32 %v1180, %v2904
        %2906 = vmatprep.mubr.bf16.mxu0 %v864
        %2907 = vmatmul.mubr.bf16.gmra.mxu0 %v863
        %v2908 = vpop.f32.mrf.mxu0
        %v2909 = vadd.f32 %v1176, %v2908
        %v2910 = vpop.f32.mrf.mxu0
        %v2911 = vadd.f32 %v1180, %v2910
        %v2912 = vpop.f32.mrf.mxu0
        %v2913 = vadd.f32 %v1176, %v2912
        %v2914 = vpop.f32.mrf.mxu0
        %v2915 = vadd.f32 %v1180, %v2914
        %2916 = vmatprep.mubr.bf16.mxu0 %v870
        %2917 = vmatmul.mubr.bf16.gmra.mxu0 %v869
        %v2918 = vpop.f32.mrf.mxu0
        %v2919 = vadd.f32 %v1176, %v2918
        %v2920 = vpop.f32.mrf.mxu0
        %v2921 = vadd.f32 %v1180, %v2920
        %v2922 = vpop.f32.mrf.mxu0
        %v2923 = vadd.f32 %v1176, %v2922
        %v2924 = vpop.f32.mrf.mxu0
        %v2925 = vadd.f32 %v1180, %v2924
        %2926 = vdwg.mxu0
        %2927 = vmatprep.subr.bf16.mxu0 %v2200
        %2928 = vmatpush1.bf16.msra.mxu0 %v2199
        %2929 = vmatprep.subr.bf16.mxu0 %v2194
        %2930 = vmatpush1.bf16.msra.mxu0 %v2193
        %2931 = vmatprep.subr.bf16.mxu0 %v2188
        %2932 = vmatpush1.bf16.msra.mxu0 %v2187
        %2933 = vmatprep.subr.bf16.mxu0 %v2182
        %2934 = vmatpush1.bf16.msra.mxu0 %v2181
        %2935 = vmatprep.subr.bf16.mxu0 %v2176
        %2936 = vmatpush1.bf16.msra.mxu0 %v2175
        %2937 = vmatprep.subr.bf16.mxu0 %v2170
        %2938 = vmatpush1.bf16.msra.mxu0 %v2169
        %2939 = vmatprep.subr.bf16.mxu0 %v2164
        %2940 = vmatpush1.bf16.msra.mxu0 %v2163
        %2941 = vmatprep.subr.bf16.mxu0 %v2158
        %2942 = vmatpush1.bf16.msra.mxu0 %v2157
        %2943 = vmatprep.subr.bf16.mxu0 %v2248
        %2944 = vmatpush2.bf16.msra.mxu0 %v2247
        %2945 = vmatprep.subr.bf16.mxu0 %v2242
        %2946 = vmatpush2.bf16.msra.mxu0 %v2241
        %2947 = vmatprep.subr.bf16.mxu0 %v2236
        %2948 = vmatpush2.bf16.msra.mxu0 %v2235
        %2949 = vmatprep.subr.bf16.mxu0 %v2230
        %2950 = vmatpush2.bf16.msra.mxu0 %v2229
        %2951 = vmatprep.subr.bf16.mxu0 %v2224
        %2952 = vmatpush2.bf16.msra.mxu0 %v2223
        %2953 = vmatprep.subr.bf16.mxu0 %v2218
        %2954 = vmatpush2.bf16.msra.mxu0 %v2217
        %2955 = vmatprep.subr.bf16.mxu0 %v2212
        %2956 = vmatpush2.bf16.msra.mxu0 %v2211
        %2957 = vmatprep.subr.bf16.mxu0 %v2206
        %2958 = vmatpush2.bf16.msra.mxu0 %v2205
        %2959 = vmatprep.mubr.bf16.mxu0 %v854
        %2960 = vmatmul.mubr.bf16.gmra.mxu0 %v853
        %v2961 = vpop.f32.mrf.mxu0
        %v2962 = vadd.f32 %v2889, %v2961
        %v2963 = vpop.f32.mrf.mxu0
        %v2964 = vadd.f32 %v2891, %v2963
        %v2965 = vpop.f32.mrf.mxu0
        %v2966 = vadd.f32 %v2893, %v2965
        %v2967 = vpop.f32.mrf.mxu0
        %v2968 = vadd.f32 %v2895, %v2967
        %2969 = vmatprep.mubr.bf16.mxu0 %v860
        %2970 = vmatmul.mubr.bf16.gmra.mxu0 %v859
        %v2971 = vpop.f32.mrf.mxu0
        %v2972 = vadd.f32 %v2899, %v2971
        %v2973 = vpop.f32.mrf.mxu0
        %v2974 = vadd.f32 %v2901, %v2973
        %v2975 = vpop.f32.mrf.mxu0
        %v2976 = vadd.f32 %v2903, %v2975
        %v2977 = vpop.f32.mrf.mxu0
        %v2978 = vadd.f32 %v2905, %v2977
        %2979 = vmatprep.mubr.bf16.mxu0 %v866
        %2980 = vmatmul.mubr.bf16.gmra.mxu0 %v865
        %v2981 = vpop.f32.mrf.mxu0
        %v2982 = vadd.f32 %v2909, %v2981
        %v2983 = vpop.f32.mrf.mxu0
        %v2984 = vadd.f32 %v2911, %v2983
        %v2985 = vpop.f32.mrf.mxu0
        %v2986 = vadd.f32 %v2913, %v2985
        %v2987 = vpop.f32.mrf.mxu0
        %v2988 = vadd.f32 %v2915, %v2987
        %2989 = vmatprep.mubr.bf16.mxu0 %v872
        %2990 = vmatmul.mubr.bf16.gmra.mxu0 %v871
        %v2991 = vpop.f32.mrf.mxu0
        %v2992 = vadd.f32 %v2919, %v2991
        %v2993 = vpop.f32.mrf.mxu0
        %v2994 = vadd.f32 %v2921, %v2993
        %v2995 = vpop.f32.mrf.mxu0
        %v2996 = vadd.f32 %v2923, %v2995
        %v2997 = vpop.f32.mrf.mxu0
        %v2998 = vadd.f32 %v2925, %v2997
        %2999 = vdwg.mxu0
        %3000 = vmatprep.subr.bf16.mxu0 %v2296
        %3001 = vmatpush1.bf16.msra.mxu0 %v2295
        %3002 = vmatprep.subr.bf16.mxu0 %v2290
        %3003 = vmatpush1.bf16.msra.mxu0 %v2289
        %3004 = vmatprep.subr.bf16.mxu0 %v2284
        %3005 = vmatpush1.bf16.msra.mxu0 %v2283
        %3006 = vmatprep.subr.bf16.mxu0 %v2278
        %3007 = vmatpush1.bf16.msra.mxu0 %v2277
        %3008 = vmatprep.subr.bf16.mxu0 %v2272
        %3009 = vmatpush1.bf16.msra.mxu0 %v2271
        %3010 = vmatprep.subr.bf16.mxu0 %v2266
        %3011 = vmatpush1.bf16.msra.mxu0 %v2265
        %3012 = vmatprep.subr.bf16.mxu0 %v2260
        %3013 = vmatpush1.bf16.msra.mxu0 %v2259
        %3014 = vmatprep.subr.bf16.mxu0 %v2254
        %3015 = vmatpush1.bf16.msra.mxu0 %v2253
        %3016 = vmatprep.subr.bf16.mxu0 %v2344
        %3017 = vmatpush2.bf16.msra.mxu0 %v2343
        %3018 = vmatprep.subr.bf16.mxu0 %v2338
        %3019 = vmatpush2.bf16.msra.mxu0 %v2337
        %3020 = vmatprep.subr.bf16.mxu0 %v2332
        %3021 = vmatpush2.bf16.msra.mxu0 %v2331
        %3022 = vmatprep.subr.bf16.mxu0 %v2326
        %3023 = vmatpush2.bf16.msra.mxu0 %v2325
        %3024 = vmatprep.subr.bf16.mxu0 %v2320
        %3025 = vmatpush2.bf16.msra.mxu0 %v2319
        %3026 = vmatprep.subr.bf16.mxu0 %v2314
        %3027 = vmatpush2.bf16.msra.mxu0 %v2313
        %3028 = vmatprep.subr.bf16.mxu0 %v2308
        %3029 = vmatpush2.bf16.msra.mxu0 %v2307
        %3030 = vmatprep.subr.bf16.mxu0 %v2302
        %3031 = vmatpush2.bf16.msra.mxu0 %v2301
        %3032 = vmatprep.mubr.bf16.mxu0 %v856
        %3033 = vmatmul.mubr.bf16.gmra.mxu0 %v855
        %v3034 = vpop.f32.mrf.mxu0
        %v3035 = vadd.f32 %v2962, %v3034
        %v3036 = vpop.f32.mrf.mxu0
        %v3037 = vadd.f32 %v2964, %v3036
        %v3038 = vpop.f32.mrf.mxu0
        %v3039 = vadd.f32 %v2966, %v3038
        %v3040 = vpop.f32.mrf.mxu0
        %v3041 = vadd.f32 %v2968, %v3040
        %3042 = vmatprep.mubr.bf16.mxu0 %v862
        %3043 = vmatmul.mubr.bf16.gmra.mxu0 %v861
        %v3044 = vpop.f32.mrf.mxu0
        %v3045 = vadd.f32 %v2972, %v3044
        %v3046 = vpop.f32.mrf.mxu0
        %v3047 = vadd.f32 %v2974, %v3046
        %v3048 = vpop.f32.mrf.mxu0
        %v3049 = vadd.f32 %v2976, %v3048
        %v3050 = vpop.f32.mrf.mxu0
        %v3051 = vadd.f32 %v2978, %v3050
        %3052 = vmatprep.mubr.bf16.mxu0 %v868
        %3053 = vmatmul.mubr.bf16.gmra.mxu0 %v867
        %v3054 = vpop.f32.mrf.mxu0
        %v3055 = vadd.f32 %v2982, %v3054
        %v3056 = vpop.f32.mrf.mxu0
        %v3057 = vadd.f32 %v2984, %v3056
        %v3058 = vpop.f32.mrf.mxu0
        %v3059 = vadd.f32 %v2986, %v3058
        %v3060 = vpop.f32.mrf.mxu0
        %v3061 = vadd.f32 %v2988, %v3060
        %3062 = vmatprep.mubr.bf16.mxu0 %v874
        %3063 = vmatmul.mubr.bf16.gmra.mxu0 %v873
        %v3064 = vpop.f32.mrf.mxu0
        %v3065 = vadd.f32 %v2992, %v3064
        %v3066 = vpop.f32.mrf.mxu0
        %v3067 = vadd.f32 %v2994, %v3066
        %v3068 = vpop.f32.mrf.mxu0
        %v3069 = vadd.f32 %v2996, %v3068
        %v3070 = vpop.f32.mrf.mxu0
        %v3071 = vadd.f32 %v2998, %v3070
        %3072 = vdwg.mxu0
        %3073 = vmatprep.subr.bf16.mxu0 %v2106
        %3074 = vmatpush1.bf16.msra.mxu0 %v2105
        %3075 = vmatprep.subr.bf16.mxu0 %v2100
        %3076 = vmatpush1.bf16.msra.mxu0 %v2099
        %3077 = vmatprep.subr.bf16.mxu0 %v2094
        %3078 = vmatpush1.bf16.msra.mxu0 %v2093
        %3079 = vmatprep.subr.bf16.mxu0 %v2088
        %3080 = vmatpush1.bf16.msra.mxu0 %v2087
        %3081 = vmatprep.subr.bf16.mxu0 %v2082
        %3082 = vmatpush1.bf16.msra.mxu0 %v2081
        %3083 = vmatprep.subr.bf16.mxu0 %v2076
        %3084 = vmatpush1.bf16.msra.mxu0 %v2075
        %3085 = vmatprep.subr.bf16.mxu0 %v2070
        %3086 = vmatpush1.bf16.msra.mxu0 %v2069
        %3087 = vmatprep.subr.bf16.mxu0 %v2064
        %3088 = vmatpush1.bf16.msra.mxu0 %v2063
        %3089 = vmatprep.subr.bf16.mxu0 %v2154
        %3090 = vmatpush2.bf16.msra.mxu0 %v2153
        %3091 = vmatprep.subr.bf16.mxu0 %v2148
        %3092 = vmatpush2.bf16.msra.mxu0 %v2147
        %3093 = vmatprep.subr.bf16.mxu0 %v2142
        %3094 = vmatpush2.bf16.msra.mxu0 %v2141
        %3095 = vmatprep.subr.bf16.mxu0 %v2136
        %3096 = vmatpush2.bf16.msra.mxu0 %v2135
        %3097 = vmatprep.subr.bf16.mxu0 %v2130
        %3098 = vmatpush2.bf16.msra.mxu0 %v2129
        %3099 = vmatprep.subr.bf16.mxu0 %v2124
        %3100 = vmatpush2.bf16.msra.mxu0 %v2123
        %3101 = vmatprep.subr.bf16.mxu0 %v2118
        %3102 = vmatpush2.bf16.msra.mxu0 %v2117
        %3103 = vmatprep.subr.bf16.mxu0 %v2112
        %3104 = vmatpush2.bf16.msra.mxu0 %v2111
        %3105 = vmatprep.mubr.bf16.mxu0 %v852
        %3106 = vmatmul.mubr.bf16.gmra.mxu0 %v851
        %v3107 = vpop.f32.mrf.mxu0
        %v3108 = vadd.f32 %v1184, %v3107
        %v3109 = vpop.f32.mrf.mxu0
        %v3110 = vadd.f32 %v1188, %v3109
        %v3111 = vpop.f32.mrf.mxu0
        %v3112 = vadd.f32 %v1184, %v3111
        %v3113 = vpop.f32.mrf.mxu0
        %v3114 = vadd.f32 %v1188, %v3113
        %3115 = vmatprep.mubr.bf16.mxu0 %v858
        %3116 = vmatmul.mubr.bf16.gmra.mxu0 %v857
        %v3117 = vpop.f32.mrf.mxu0
        %v3118 = vadd.f32 %v1184, %v3117
        %v3119 = vpop.f32.mrf.mxu0
        %v3120 = vadd.f32 %v1188, %v3119
        %v3121 = vpop.f32.mrf.mxu0
        %v3122 = vadd.f32 %v1184, %v3121
        %v3123 = vpop.f32.mrf.mxu0
        %v3124 = vadd.f32 %v1188, %v3123
        %3125 = vmatprep.mubr.bf16.mxu0 %v864
        %3126 = vmatmul.mubr.bf16.gmra.mxu0 %v863
        %v3127 = vpop.f32.mrf.mxu0
        %v3128 = vadd.f32 %v1184, %v3127
        %v3129 = vpop.f32.mrf.mxu0
        %v3130 = vadd.f32 %v1188, %v3129
        %v3131 = vpop.f32.mrf.mxu0
        %v3132 = vadd.f32 %v1184, %v3131
        %v3133 = vpop.f32.mrf.mxu0
        %v3134 = vadd.f32 %v1188, %v3133
        %3135 = vmatprep.mubr.bf16.mxu0 %v870
        %3136 = vmatmul.mubr.bf16.gmra.mxu0 %v869
        %v3137 = vpop.f32.mrf.mxu0
        %v3138 = vadd.f32 %v1184, %v3137
        %v3139 = vpop.f32.mrf.mxu0
        %v3140 = vadd.f32 %v1188, %v3139
        %v3141 = vpop.f32.mrf.mxu0
        %v3142 = vadd.f32 %v1184, %v3141
        %v3143 = vpop.f32.mrf.mxu0
        %v3144 = vadd.f32 %v1188, %v3143
        %3145 = vdwg.mxu0
        %3146 = vmatprep.subr.bf16.mxu0 %v2202
        %3147 = vmatpush1.bf16.msra.mxu0 %v2201
        %3148 = vmatprep.subr.bf16.mxu0 %v2196
        %3149 = vmatpush1.bf16.msra.mxu0 %v2195
        %3150 = vmatprep.subr.bf16.mxu0 %v2190
        %3151 = vmatpush1.bf16.msra.mxu0 %v2189
        %3152 = vmatprep.subr.bf16.mxu0 %v2184
        %3153 = vmatpush1.bf16.msra.mxu0 %v2183
        %3154 = vmatprep.subr.bf16.mxu0 %v2178
        %3155 = vmatpush1.bf16.msra.mxu0 %v2177
        %3156 = vmatprep.subr.bf16.mxu0 %v2172
        %3157 = vmatpush1.bf16.msra.mxu0 %v2171
        %3158 = vmatprep.subr.bf16.mxu0 %v2166
        %3159 = vmatpush1.bf16.msra.mxu0 %v2165
        %3160 = vmatprep.subr.bf16.mxu0 %v2160
        %3161 = vmatpush1.bf16.msra.mxu0 %v2159
        %3162 = vmatprep.subr.bf16.mxu0 %v2250
        %3163 = vmatpush2.bf16.msra.mxu0 %v2249
        %3164 = vmatprep.subr.bf16.mxu0 %v2244
        %3165 = vmatpush2.bf16.msra.mxu0 %v2243
        %3166 = vmatprep.subr.bf16.mxu0 %v2238
        %3167 = vmatpush2.bf16.msra.mxu0 %v2237
        %3168 = vmatprep.subr.bf16.mxu0 %v2232
        %3169 = vmatpush2.bf16.msra.mxu0 %v2231
        %3170 = vmatprep.subr.bf16.mxu0 %v2226
        %3171 = vmatpush2.bf16.msra.mxu0 %v2225
        %3172 = vmatprep.subr.bf16.mxu0 %v2220
        %3173 = vmatpush2.bf16.msra.mxu0 %v2219
        %3174 = vmatprep.subr.bf16.mxu0 %v2214
        %3175 = vmatpush2.bf16.msra.mxu0 %v2213
        %3176 = vmatprep.subr.bf16.mxu0 %v2208
        %3177 = vmatpush2.bf16.msra.mxu0 %v2207
        %3178 = vmatprep.mubr.bf16.mxu0 %v854
        %3179 = vmatmul.mubr.bf16.gmra.mxu0 %v853
        %v3180 = vpop.f32.mrf.mxu0
        %v3181 = vadd.f32 %v3108, %v3180
        %v3182 = vpop.f32.mrf.mxu0
        %v3183 = vadd.f32 %v3110, %v3182
        %v3184 = vpop.f32.mrf.mxu0
        %v3185 = vadd.f32 %v3112, %v3184
        %v3186 = vpop.f32.mrf.mxu0
        %v3187 = vadd.f32 %v3114, %v3186
        %3188 = vmatprep.mubr.bf16.mxu0 %v860
        %3189 = vmatmul.mubr.bf16.gmra.mxu0 %v859
        %v3190 = vpop.f32.mrf.mxu0
        %v3191 = vadd.f32 %v3118, %v3190
        %v3192 = vpop.f32.mrf.mxu0
        %v3193 = vadd.f32 %v3120, %v3192
        %v3194 = vpop.f32.mrf.mxu0
        %v3195 = vadd.f32 %v3122, %v3194
        %v3196 = vpop.f32.mrf.mxu0
        %v3197 = vadd.f32 %v3124, %v3196
        %3198 = vmatprep.mubr.bf16.mxu0 %v866
        %3199 = vmatmul.mubr.bf16.gmra.mxu0 %v865
        %v3200 = vpop.f32.mrf.mxu0
        %v3201 = vadd.f32 %v3128, %v3200
        %v3202 = vpop.f32.mrf.mxu0
        %v3203 = vadd.f32 %v3130, %v3202
        %v3204 = vpop.f32.mrf.mxu0
        %v3205 = vadd.f32 %v3132, %v3204
        %v3206 = vpop.f32.mrf.mxu0
        %v3207 = vadd.f32 %v3134, %v3206
        %3208 = vmatprep.mubr.bf16.mxu0 %v872
        %3209 = vmatmul.mubr.bf16.gmra.mxu0 %v871
        %v3210 = vpop.f32.mrf.mxu0
        %v3211 = vadd.f32 %v3138, %v3210
        %v3212 = vpop.f32.mrf.mxu0
        %v3213 = vadd.f32 %v3140, %v3212
        %v3214 = vpop.f32.mrf.mxu0
        %v3215 = vadd.f32 %v3142, %v3214
        %v3216 = vpop.f32.mrf.mxu0
        %v3217 = vadd.f32 %v3144, %v3216
        %3218 = vdwg.mxu0
        %3219 = vmatprep.subr.bf16.mxu0 %v2298
        %3220 = vmatpush1.bf16.msra.mxu0 %v2297
        %3221 = vmatprep.subr.bf16.mxu0 %v2292
        %3222 = vmatpush1.bf16.msra.mxu0 %v2291
        %3223 = vmatprep.subr.bf16.mxu0 %v2286
        %3224 = vmatpush1.bf16.msra.mxu0 %v2285
        %3225 = vmatprep.subr.bf16.mxu0 %v2280
        %3226 = vmatpush1.bf16.msra.mxu0 %v2279
        %3227 = vmatprep.subr.bf16.mxu0 %v2274
        %3228 = vmatpush1.bf16.msra.mxu0 %v2273
        %3229 = vmatprep.subr.bf16.mxu0 %v2268
        %3230 = vmatpush1.bf16.msra.mxu0 %v2267
        %3231 = vmatprep.subr.bf16.mxu0 %v2262
        %3232 = vmatpush1.bf16.msra.mxu0 %v2261
        %3233 = vmatprep.subr.bf16.mxu0 %v2256
        %3234 = vmatpush1.bf16.msra.mxu0 %v2255
        %3235 = vmatprep.subr.bf16.mxu0 %v2346
        %3236 = vmatpush2.bf16.msra.mxu0 %v2345
        %3237 = vmatprep.subr.bf16.mxu0 %v2340
        %3238 = vmatpush2.bf16.msra.mxu0 %v2339
        %3239 = vmatprep.subr.bf16.mxu0 %v2334
        %3240 = vmatpush2.bf16.msra.mxu0 %v2333
        %3241 = vmatprep.subr.bf16.mxu0 %v2328
        %3242 = vmatpush2.bf16.msra.mxu0 %v2327
        %3243 = vmatprep.subr.bf16.mxu0 %v2322
        %3244 = vmatpush2.bf16.msra.mxu0 %v2321
        %3245 = vmatprep.subr.bf16.mxu0 %v2316
        %3246 = vmatpush2.bf16.msra.mxu0 %v2315
        %3247 = vmatprep.subr.bf16.mxu0 %v2310
        %3248 = vmatpush2.bf16.msra.mxu0 %v2309
        %3249 = vmatprep.subr.bf16.mxu0 %v2304
        %3250 = vmatpush2.bf16.msra.mxu0 %v2303
        %3251 = vmatprep.mubr.bf16.mxu0 %v856
        %3252 = vmatmul.mubr.bf16.gmra.mxu0 %v855
        %v3253 = vpop.f32.mrf.mxu0
        %v3254 = vadd.f32 %v3181, %v3253
        %v3255 = vpop.f32.mrf.mxu0
        %v3256 = vadd.f32 %v3183, %v3255
        %v3257 = vpop.f32.mrf.mxu0
        %v3258 = vadd.f32 %v3185, %v3257
        %v3259 = vpop.f32.mrf.mxu0
        %v3260 = vadd.f32 %v3187, %v3259
        %3261 = vmatprep.mubr.bf16.mxu0 %v862
        %3262 = vmatmul.mubr.bf16.gmra.mxu0 %v861
        %v3263 = vpop.f32.mrf.mxu0
        %v3264 = vadd.f32 %v3191, %v3263
        %v3265 = vpop.f32.mrf.mxu0
        %v3266 = vadd.f32 %v3193, %v3265
        %v3267 = vpop.f32.mrf.mxu0
        %v3268 = vadd.f32 %v3195, %v3267
        %v3269 = vpop.f32.mrf.mxu0
        %v3270 = vadd.f32 %v3197, %v3269
        %3271 = vmatprep.mubr.bf16.mxu0 %v868
        %3272 = vmatmul.mubr.bf16.gmra.mxu0 %v867
        %v3273 = vpop.f32.mrf.mxu0
        %v3274 = vadd.f32 %v3201, %v3273
        %v3275 = vpop.f32.mrf.mxu0
        %v3276 = vadd.f32 %v3203, %v3275
        %v3277 = vpop.f32.mrf.mxu0
        %v3278 = vadd.f32 %v3205, %v3277
        %v3279 = vpop.f32.mrf.mxu0
        %v3280 = vadd.f32 %v3207, %v3279
        %3281 = vmatprep.mubr.bf16.mxu0 %v874
        %3282 = vmatmul.mubr.bf16.gmra.mxu0 %v873
        %v3283 = vpop.f32.mrf.mxu0
        %v3284 = vadd.f32 %v3211, %v3283
        %v3285 = vpop.f32.mrf.mxu0
        %v3286 = vadd.f32 %v3213, %v3285
        %v3287 = vpop.f32.mrf.mxu0
        %v3288 = vadd.f32 %v3215, %v3287
        %v3289 = vpop.f32.mrf.mxu0
        %v3290 = vadd.f32 %v3217, %v3289
        %3291 = vdwg.mxu0
        %v3292 = vadd.f32 %v298, %v2816
        %v3293 = vadd.f32 %v299, %v2818
        %v3294 = vadd.f32 %v300, %v3035
        %v3295 = vadd.f32 %v301, %v3037
        %v3296 = vadd.f32 %v302, %v3254
        %v3297 = vadd.f32 %v303, %v3256
        %v3298 = vadd.f32 %v304, %v2820
        %v3299 = vadd.f32 %v305, %v2822
        %v3300 = vadd.f32 %v306, %v3039
        %v3301 = vadd.f32 %v307, %v3041
        %v3302 = vadd.f32 %v308, %v3258
        %v3303 = vadd.f32 %v309, %v3260
        %v3304 = vadd.f32 %v310, %v2826
        %v3305 = vadd.f32 %v311, %v2828
        %v3306 = vadd.f32 %v312, %v3045
        %v3307 = vadd.f32 %v313, %v3047
        %v3308 = vadd.f32 %v314, %v3264
        %v3309 = vadd.f32 %v315, %v3266
        %v3310 = vadd.f32 %v316, %v2830
        %v3311 = vadd.f32 %v317, %v2832
        %v3312 = vadd.f32 %v318, %v3049
        %v3313 = vadd.f32 %v319, %v3051
        %v3314 = vadd.f32 %v320, %v3268
        %v3315 = vadd.f32 %v321, %v3270
        %v3316 = vadd.f32 %v322, %v2836
        %v3317 = vadd.f32 %v323, %v2838
        %v3318 = vadd.f32 %v324, %v3055
        %v3319 = vadd.f32 %v325, %v3057
        %v3320 = vadd.f32 %v326, %v3274
        %v3321 = vadd.f32 %v327, %v3276
        %v3322 = vadd.f32 %v328, %v2840
        %v3323 = vadd.f32 %v329, %v2842
        %v3324 = vadd.f32 %v330, %v3059
        %v3325 = vadd.f32 %v331, %v3061
        %v3326 = vadd.f32 %v332, %v3278
        %v3327 = vadd.f32 %v333, %v3280
        %v3328 = vadd.f32 %v334, %v2846
        %v3329 = vadd.f32 %v335, %v2848
        %v3330 = vadd.f32 %v336, %v3065
        %v3331 = vadd.f32 %v337, %v3067
        %v3332 = vadd.f32 %v338, %v3284
        %v3333 = vadd.f32 %v339, %v3286
        %v3334 = vadd.f32 %v340, %v2850
        %v3335 = vadd.f32 %v341, %v2852
        %v3336 = vadd.f32 %v342, %v3069
        %v3337 = vadd.f32 %v343, %v3071
        %v3338 = vadd.f32 %v344, %v3288
        %v3339 = vadd.f32 %v345, %v3290
        %3340 = vst [vmem:[%s295] sm:$0xff] %v3292
        %3341 = vst [vmem:[%s295 + $0x8] sm:$0xff] %v3293
        %3342 = vst [vmem:[%s295 + $0x10] sm:$0xff] %v3294
        %3343 = vst [vmem:[%s295 + $0x18] sm:$0xff] %v3295
        %3344 = vst [vmem:[%s295 + $0x20] sm:$0xff] %v3296
        %3345 = vst [vmem:[%s295 + $0x28] sm:$0xff] %v3297
        %3346 = vst [vmem:[%s295 + $0x30] sm:$0xff] %v3298
        %3347 = vst [vmem:[%s295 + $0x38] sm:$0xff] %v3299
        %3348 = vst [vmem:[%s295 + $0x40] sm:$0xff] %v3300
        %3349 = vst [vmem:[%s295 + $0x48] sm:$0xff] %v3301
        %3350 = vst [vmem:[%s295 + $0x50] sm:$0xff] %v3302
        %3351 = vst [vmem:[%s295 + $0x58] sm:$0xff] %v3303
        %3352 = vst [vmem:[%s295 + $0x60] sm:$0xff] %v3304
        %3353 = vst [vmem:[%s295 + $0x68] sm:$0xff] %v3305
        %3354 = vst [vmem:[%s295 + $0x70] sm:$0xff] %v3306
        %3355 = vst [vmem:[%s295 + $0x78] sm:$0xff] %v3307
        %3356 = vst [vmem:[%s295 + $0x80] sm:$0xff] %v3308
        %3357 = vst [vmem:[%s295 + $0x88] sm:$0xff] %v3309
        %3358 = vst [vmem:[%s295 + $0x90] sm:$0xff] %v3310
        %3359 = vst [vmem:[%s295 + $0x98] sm:$0xff] %v3311
        %3360 = vst [vmem:[%s295 + $0xa0] sm:$0xff] %v3312
        %3361 = vst [vmem:[%s295 + $0xa8] sm:$0xff] %v3313
        %3362 = vst [vmem:[%s295 + $0xb0] sm:$0xff] %v3314
        %3363 = vst [vmem:[%s295 + $0xb8] sm:$0xff] %v3315
        %3364 = vst [vmem:[%s295 + $0xc0] sm:$0xff] %v3316
        %3365 = vst [vmem:[%s295 + $0xc8] sm:$0xff] %v3317
        %3366 = vst [vmem:[%s295 + $0xd0] sm:$0xff] %v3318
        %3367 = vst [vmem:[%s295 + $0xd8] sm:$0xff] %v3319
        %3368 = vst [vmem:[%s295 + $0xe0] sm:$0xff] %v3320
        %3369 = vst [vmem:[%s295 + $0xe8] sm:$0xff] %v3321
        %3370 = vst [vmem:[%s295 + $0xf0] sm:$0xff] %v3322
        %3371 = vst [vmem:[%s295 + $0xf8] sm:$0xff] %v3323
        %3372 = vst [vmem:[%s295 + $0x100] sm:$0xff] %v3324
        %3373 = vst [vmem:[%s295 + $0x108] sm:$0xff] %v3325
        %3374 = vst [vmem:[%s295 + $0x110] sm:$0xff] %v3326
        %3375 = vst [vmem:[%s295 + $0x118] sm:$0xff] %v3327
        %3376 = vst [vmem:[%s295 + $0x120] sm:$0xff] %v3328
        %3377 = vst [vmem:[%s295 + $0x128] sm:$0xff] %v3329
        %3378 = vst [vmem:[%s295 + $0x130] sm:$0xff] %v3330
        %3379 = vst [vmem:[%s295 + $0x138] sm:$0xff] %v3331
        %3380 = vst [vmem:[%s295 + $0x140] sm:$0xff] %v3332
        %3381 = vst [vmem:[%s295 + $0x148] sm:$0xff] %v3333
        %3382 = vst [vmem:[%s295 + $0x150] sm:$0xff] %v3334
        %3383 = vst [vmem:[%s295 + $0x158] sm:$0xff] %v3335
        %3384 = vst [vmem:[%s295 + $0x160] sm:$0xff] %v3336
        %3385 = vst [vmem:[%s295 + $0x168] sm:$0xff] %v3337
        %3386 = vst [vmem:[%s295 + $0x170] sm:$0xff] %v3338
        %3387 = vst [vmem:[%s295 + $0x178] sm:$0xff] %v3339
        %s3388 = sand.u32 %s142, 1
        %s3389 = scalar_lea.sflag [#allocation4], %s3388
        %s3390 = sand.u32 %s142, 1
        %s3391 = smul.addr %s3390, 384
        %s3392 = scalar_lea.vmem [#allocation11], %s3391
        // Predicated region
        $region61: #{tpu_custom_call.1} parent=39 // pred_check
          %p3393 = pneg %p152
        $region62: #{tpu_custom_call.1} parent=39 // pred_check_branch
          %3395 = sbr.rel (%p3393) target = $region64
        $region63: #{tpu_custom_call.1} parent=39 // pred_region
          %s3396 = smul.u32 8, %s24
          %s3398 = ssub.s32 6144, 6144
          %3399 = vsyncadd %s3389, %s3398
          %s3400 = smul.addr %s3396, 6
          %s3401 = smul.addr %s3400, 128
          %s3402 = scalar_lea.hbm %s5, %s3401
          %s3403 = sshll.u32 %s3392, 4
          %s3404 = int_to_ptr.vmem [resolvable:$true] %s3403
          %3409 = dma.vmem_to_hbm [thread:$0]  %s3404, 6144, %s3402, %s3389, 768, 768, 48
        $region64: #{tpu_custom_call.1} parent=39 // pred_fallthru
          _
      $region40: #{tpu_custom_call.1} parent=5 // pred_fallthru
        _
      %p3410 = scmp.le.s32.totalorder 2, %s19
      // Predicated region
      $region65: #{tpu_custom_call.1} parent=5 // pred_check
        %p3411 = pneg %p3410
      $region66: #{tpu_custom_call.1} parent=5 // pred_check_branch
        %3413 = sbr.rel (%p3411) target = $region68
      $region67: #{tpu_custom_call.1} parent=5 // pred_region
        %s3414 = ssub.s32 %s19, 2
        // Predicated region
        $region69: #{tpu_custom_call.1} parent=67 // pred_check
          %p3415 = pneg %p158
        $region70: #{tpu_custom_call.1} parent=67 // pred_check_branch
          %3417 = sbr.rel (%p3415) target = $region72
        $region71: #{tpu_custom_call.1} parent=67 // pred_region
          %s3418 = sand.u32 %s143, 1
          %s3419 = scalar_lea.sflag [#allocation4], %s3418
          %s3420 = sand.u32 %s143, 1
          %s3421 = smul.addr %s3420, 384
          %s3422 = scalar_lea.vmem [#allocation11], %s3421
          %3423 = dma.done %s3419, 6144
        $region72: #{tpu_custom_call.1} parent=67 // pred_fallthru
          _
      $region68: #{tpu_custom_call.1} parent=5 // pred_fallthru
        _
    $region6: #{tpu_custom_call.1} parent=1 // loop_footer
      %s23 = sadd.s32 1, %s19
    $region7: #{tpu_custom_call.1} parent=1 // loop_footer_branch
      %18 = sbr.rel target = $region3
    $region8: #{tpu_custom_call.1} parent=1 // loop_exit
      _
    %3424 = vsyncpa [#allocation3], 1
    %s3425 = scalar_lea.sflag [#allocation3], 1
    %3426 = vsyncpa %s3425, 1
    %3427 = vsyncpa [#allocation6], 1
    %3428 = vsyncpa [#allocation9], 1
    %3429 = vsyncpa [#allocation4], 1
    %s3430 = scalar_lea.sflag [#allocation4], 1
    %3431 = vsyncpa %s3430, 1

</llo_original>
